<compile_context>
chip_gen: v7x
topology: tpu7x:2x2x1
jax: 0.10.0
libtpu: 0.0.40
codegen_flags: <defaults>
</compile_context>

<pallas_src>
import jax
import jax.numpy as jnp
from jax.experimental import pallas as pl
from jax.experimental.pallas import tpu as pltpu


def lstm_seq_kernel(x_ref, w_in_ref, b_in_ref, whh_ref, wlin_ref, blin_ref,
                    out_ref, gin_ref, h2acc_ref):
    """Whole-sequence stacked-LSTMCell forward, one invocation.

    x_ref     : ((S+1)*Bp, E)  time-major embedded sequence, 8-row blocks per
                               step (rows B..Bp-1 zero), last block zero (drain)
    w_in_ref  : (E, 8H)   interleaved [wih1^T | 0] input weight
    b_in_ref  : (1, 8H)   interleaved fused biases [b1 | b2]
    whh_ref   : (2H, 8H)  interleaved block-diag [[whh1^T, wih2^T],[0, whh2^T]]
    wlin_ref  : (S*H, S)  block-diag kron(I_S, wlin^T)
    blin_ref  : (1, 1)    linear bias (SMEM scalar)
    out_ref   : (B, S)    softmax over the sequence axis
    gin_ref   : ((S+1)*Bp, 8H) scratch: per-step input projections
    h2acc_ref : (Bp, S*H) scratch: h2_t at lanes [t*H:(t+1)*H]
    """
    B, S = out_ref.shape
    H = whh_ref.shape[0] // 2
    Bp = h2acc_ref.shape[0]

    # ---- prologue: time-parallel input projection, one MXU call ----
    # Cell-1 gate columns get x@wih1^T + b1; cell-2 gate columns get just b2.
    gin_ref[...] = (jnp.dot(x_ref[...], w_in_ref[...],
                            preferred_element_type=jnp.float32)
                    + b_in_ref[...])

    whh = whh_ref[...]                                   # (2H, 8H), loop-invariant

    # Skewed state: hcat = [h1_{t-1}, h2_{t-2}], ccat = [c1_{t-1}, c2_{t-2}].
    hcat = jnp.zeros((Bp, 2 * H), jnp.float32)
    ccat = jnp.zeros((Bp, 2 * H), jnp.float32)

    # Fully unrolled (S is small & static).  Iteration t: cell-1 step t and
    # cell-2 step t-1 share ONE fused matmul; t == S is the cell-2 drain.
    for t in range(S + 1):
        g = gin_ref[t * Bp:(t + 1) * Bp, :]              # aligned (Bp, 8H) load
        if t > 0:
            g = g + jnp.dot(hcat, whh, preferred_element_type=jnp.float32)

        # PyTorch gate order per cell is (i, f, g, o); interleaved layout is
        # [i1,i2,f1,f2,g1,g2,o1,o2], so slices below stay lane-aligned pairs.
        i_f = jax.nn.sigmoid(g[:, :4 * H])               # [i1,i2,f1,f2]
        gg = jnp.tanh(g[:, 4 * H:6 * H])                 # [g1,g2]
        o = jax.nn.sigmoid(g[:, 6 * H:])                 # [o1,o2]
        ccat = i_f[:, 2 * H:] * ccat + i_f[:, :2 * H] * gg
        hcat = o * jnp.tanh(ccat)

        if t == 0:
            # No cell-2 step exists yet: force its half of the state to the
            # PyTorch zero-init so iteration 1 sees h2_{-1} = c2_{-1} = 0.
            keep = jax.lax.broadcasted_iota(jnp.int32, (Bp, 2 * H), 1) < H
            ccat = jnp.where(keep, ccat, 0.0)
            hcat = jnp.where(keep, hcat, 0.0)
        else:
            # hcat[:, H:] is h2_{t-1}; store off the critical path.
            h2acc_ref[:, (t - 1) * H:t * H] = hcat[:, H:]

    # ---- epilogue: Linear(H,1) over all steps as one matmul, then softmax ----
    logits = (jnp.dot(h2acc_ref[...], wlin_ref[...],
                      preferred_element_type=jnp.float32)
              + blin_ref[0, 0])                          # (Bp, S)
    lg = logits[:B, :]
    m = jnp.max(lg, axis=1, keepdims=True)
    e = jnp.exp(lg - m)
    out_ref[...] = e / jnp.sum(e, axis=1, keepdims=True)   # exact division


def prepack_params(params, seq_len):
    """One-time packing of model parameters into kernel-ready arrays (hoisted
    out of the per-call path)."""
    f32 = jnp.float32
    H = params["whh1"].shape[1]
    E = params["wih1"].shape[1]

    def il(a, b):
        # Interleave two cells' PyTorch-gate-ordered (R, 4H) column blocks into
        # (R, 8H) with layout [i1,i2,f1,f2,g1,g2,o1,o2].
        R = a.shape[0]
        return jnp.stack([a.reshape(R, 4, H), b.reshape(R, 4, H)],
                         axis=2).reshape(R, 8 * H)

    w_in = il(params["wih1"].T.astype(f32), jnp.zeros((E, 4 * H), f32))   # (E, 8H)
    b1 = (params["bih1"] + params["bhh1"]).astype(f32).reshape(1, 4 * H)
    b2 = (params["bih2"] + params["bhh2"]).astype(f32).reshape(1, 4 * H)
    b_in = il(b1, b2)                                                      # (1, 8H)
    # Skewed block-diag recurrent weight: [h1_{t-1}, h2_{t-2}] @ whh_bd gives
    # {h1@whh1^T} in cell-1 columns and {h1@wih2^T + h2@whh2^T} in cell-2 columns.
    whh_bd = jnp.concatenate(
        [il(params["whh1"].T.astype(f32), params["wih2"].T.astype(f32)),
         il(jnp.zeros((H, 4 * H), f32), params["whh2"].T.astype(f32))],
        axis=0)                                                            # (2H, 8H)
    wlin_bd = jnp.kron(jnp.eye(seq_len, dtype=f32),
                       params["wlin"].T.astype(f32))                       # (S*H, S)
    return {
        "emb": params["emb"].astype(f32),
        "w_in": w_in, "b_in": b_in, "whh_bd": whh_bd, "wlin_bd": wlin_bd,
        "blin": params["blin"].astype(f32).reshape(1, 1),
    }


@jax.jit
def sequence_forward(tokens, packed):
    """Per-call forward: embedding gather + row padding in JAX (glue), the rest
    in a single Pallas kernel."""
    B, S = tokens.shape
    E = packed["emb"].shape[1]
    H = packed["whh_bd"].shape[0] // 2
    Bp = ((B + 7) // 8) * 8            # 8-sublane-aligned rows per timestep

    # Time-major embedded sequence; pad each step's rows to Bp and append one
    # zero block for the drain iteration of the skewed recurrence.
    x = packed["emb"][tokens.T]                                    # (S, B, E)
    x = jnp.pad(x, ((0, 1), (0, Bp - B), (0, 0))).reshape((S + 1) * Bp, E)

    vmem = pl.BlockSpec(memory_space=pltpu.MemorySpace.VMEM)
    smem = pl.BlockSpec(memory_space=pltpu.MemorySpace.SMEM)
    return pl.pallas_call(
        lstm_seq_kernel,
        out_shape=jax.ShapeDtypeStruct((B, S), jnp.float32),
        in_specs=[vmem, vmem, vmem, vmem, vmem, smem],
        out_specs=vmem,
        scratch_shapes=[
            pltpu.VMEM(((S + 1) * Bp, 8 * H), jnp.float32),   # gin
            pltpu.VMEM((Bp, S * H), jnp.float32),             # h2 accumulator
        ],
    )(x, packed["w_in"], packed["b_in"], packed["whh_bd"],
      packed["wlin_bd"], packed["blin"])


def sequence_forward_ref(tokens, params):
    """Pure-JAX reference for correctness checking (PyTorch semantics)."""
    B, S = tokens.shape
    H = params["whh1"].shape[1]
    x = params["emb"][tokens].astype(jnp.float32)    # (B, S, E)
    h1 = c1 = h2 = c2 = jnp.zeros((B, H), jnp.float32)
    logits = []
    for t in range(S):
        xt = x[:, t, :]
        g1 = xt @ params["wih1"].T + params["bih1"] + h1 @ params["whh1"].T + params["bhh1"]
        i1, f1, gg1, o1 = (jax.nn.sigmoid(g1[:, :H]), jax.nn.sigmoid(g1[:, H:2*H]),
                           jnp.tanh(g1[:, 2*H:3*H]), jax.nn.sigmoid(g1[:, 3*H:]))
        c1 = f1 * c1 + i1 * gg1
        h1 = o1 * jnp.tanh(c1)
        g2 = h1 @ params["wih2"].T + params["bih2"] + h2 @ params["whh2"].T + params["bhh2"]
        i2, f2, gg2, o2 = (jax.nn.sigmoid(g2[:, :H]), jax.nn.sigmoid(g2[:, H:2*H]),
                           jnp.tanh(g2[:, 2*H:3*H]), jax.nn.sigmoid(g2[:, 3*H:]))
        c2 = f2 * c2 + i2 * gg2
        h2 = o2 * jnp.tanh(c2)
        logits.append(h2 @ params["wlin"].T + params["blin"])   # (B, 1)
    lg = jnp.concatenate(logits, axis=1)                        # (B, S)
    return jax.nn.softmax(lg, axis=1)


def make_params(key, token_size, emb_size, hidden_size):
    """Deterministic synthetic parameters (PyTorch-style uniform init)."""
    ks = jax.random.split(key, 12)
    H, E = hidden_size, emb_size
    s = 1.0 / jnp.sqrt(H)
    u = lambda k, shape, scale: jax.random.uniform(k, shape, jnp.float32, -scale, scale)
    return {
        "emb":  jax.random.normal(ks[0], (token_size, E), jnp.float32),
        "wih1": u(ks[1], (4 * H, E), s), "whh1": u(ks[2], (4 * H, H), s),
        "bih1": u(ks[3], (4 * H,), s),   "bhh1": u(ks[4], (4 * H,), s),
        "wih2": u(ks[5], (4 * H, H), s), "whh2": u(ks[6], (4 * H, H), s),
        "bih2": u(ks[7], (4 * H,), s),   "bhh2": u(ks[8], (4 * H,), s),
        "wlin": u(ks[9], (1, H), s),     "blin": u(ks[10], (1,), s),
    }


if __name__ == "__main__":
    token_size, emb_size, hidden_size = 16, 32, 32
    batch, seq = 2, 8

    key = jax.random.PRNGKey(0)
    kp, kt = jax.random.split(key)
    params = make_params(kp, token_size, emb_size, hidden_size)
    tokens = jax.random.randint(kt, (batch, seq), 0, token_size, dtype=jnp.int32)

    packed = prepack_params(params, seq)      # one-time, hoisted weight prep
    out = sequence_forward(tokens, packed)
    out = jax.block_until_ready(out)

    ref = sequence_forward_ref(tokens, params)
    assert out.shape == (batch, seq)
    # Exact softmax division now; residual differences come only from MXU pass
    # structure vs. the XLA reference matmuls.
    assert jnp.allclose(out, ref, rtol=1e-3, atol=1e-5), (out, ref)
    print("KERNEL_OK")
</pallas_src>

<mosaic_0001>
module attributes {stable_mosaic.version = 11 : i64} {
  func.func @lstm_seq_kernel(%arg0: memref<72x32xf32, #tpu.memory_space<vmem>>, %arg1: memref<32x256xf32, #tpu.memory_space<vmem>>, %arg2: memref<1x256xf32, #tpu.memory_space<vmem>>, %arg3: memref<64x256xf32, #tpu.memory_space<vmem>>, %arg4: memref<256x8xf32, #tpu.memory_space<vmem>>, %arg5: memref<1x1xf32, #tpu.memory_space<smem>>, %arg6: memref<2x8xf32, #tpu.memory_space<vmem>>, %arg7: memref<72x256xf32, #tpu.memory_space<vmem>>, %arg8: memref<8x256xf32, #tpu.memory_space<vmem>>) attributes {dimension_semantics = [], scalar_prefetch = 0 : i64, scratch_operands = 2 : i64, tpu.core_type = #tpu.core_type<tc>} {
    %c0 = arith.constant 0 : index
    %c0_0 = arith.constant 0 : index
    %0 = vector.load %arg0[%c0, %c0_0] : memref<72x32xf32, #tpu.memory_space<vmem>>, vector<72x32xf32>
    %c0_1 = arith.constant 0 : index
    %c0_2 = arith.constant 0 : index
    %1 = vector.load %arg1[%c0_1, %c0_2] : memref<32x256xf32, #tpu.memory_space<vmem>>, vector<32x256xf32>
    %cst = arith.constant dense<0.000000e+00> : vector<72x256xf32>
    %2 = tpu.matmul %0, %1, %cst {dimension_numbers = #tpu.dot_dimension_numbers<[1], [0], [0], [1], [0, 0, 1, 1], [], []>} : vector<72x32xf32>, vector<32x256xf32>, vector<72x256xf32> -> vector<72x256xf32>
    %c0_3 = arith.constant 0 : index
    %c0_4 = arith.constant 0 : index
    %3 = vector.load %arg2[%c0_3, %c0_4] : memref<1x256xf32, #tpu.memory_space<vmem>>, vector<1x256xf32>
    %4 = vector.broadcast %3 : vector<1x256xf32> to vector<72x256xf32>
    %5 = arith.addf %2, %4 : vector<72x256xf32>
    %c0_5 = arith.constant 0 : index
    %c0_6 = arith.constant 0 : index
    %6 = vector.load %arg7[%c0_5, %c0_6] : memref<72x256xf32, #tpu.memory_space<vmem>>, vector<72x256xf32>
    tpu.vector_store %arg7[%c0_5, %c0_6], %5 {strides = array<i32>} : memref<72x256xf32, #tpu.memory_space<vmem>>, vector<72x256xf32>,
    %c0_7 = arith.constant 0 : index
    %c0_8 = arith.constant 0 : index
    %7 = vector.load %arg3[%c0_7, %c0_8] : memref<64x256xf32, #tpu.memory_space<vmem>>, vector<64x256xf32>
    %cst_9 = arith.constant 0.000000e+00 : f32
    %8 = vector.broadcast %cst_9 : f32 to vector<8x64xf32>
    %c0_10 = arith.constant 0 : index
    %c0_11 = arith.constant 0 : index
    %9 = vector.load %arg7[%c0_10, %c0_11] : memref<72x256xf32, #tpu.memory_space<vmem>>, vector<8x256xf32>
    %10 = vector.extract_strided_slice %9 {offsets = [0, 0], sizes = [8, 128], strides = [1, 1]} : vector<8x256xf32> to vector<8x128xf32>
    %11 = arith.negf %10 : vector<8x128xf32>
    %12 = math.exp %11 : vector<8x128xf32>
    %cst_12 = arith.constant 1.000000e+00 : f32
    %13 = vector.broadcast %cst_12 : f32 to vector<8x128xf32>
    %14 = arith.addf %13, %12 : vector<8x128xf32>
    %15 = arith.divf %13, %14 : vector<8x128xf32>
    %16 = vector.extract_strided_slice %9 {offsets = [0, 128], sizes = [8, 64], strides = [1, 1]} : vector<8x256xf32> to vector<8x64xf32>
    %17 = math.tanh %16 : vector<8x64xf32>
    %18 = vector.extract_strided_slice %9 {offsets = [0, 192], sizes = [8, 64], strides = [1, 1]} : vector<8x256xf32> to vector<8x64xf32>
    %19 = arith.negf %18 : vector<8x64xf32>
    %20 = math.exp %19 : vector<8x64xf32>
    %cst_13 = arith.constant 1.000000e+00 : f32
    %21 = vector.broadcast %cst_13 : f32 to vector<8x64xf32>
    %22 = arith.addf %21, %20 : vector<8x64xf32>
    %23 = arith.divf %21, %22 : vector<8x64xf32>
    %24 = vector.extract_strided_slice %15 {offsets = [0, 64], sizes = [8, 64], strides = [1, 1]} : vector<8x128xf32> to vector<8x64xf32>
    %25 = arith.mulf %24, %8 : vector<8x64xf32>
    %26 = vector.extract_strided_slice %15 {offsets = [0, 0], sizes = [8, 64], strides = [1, 1]} : vector<8x128xf32> to vector<8x64xf32>
    %27 = arith.mulf %26, %17 : vector<8x64xf32>
    %28 = arith.addf %25, %27 : vector<8x64xf32>
    %29 = math.tanh %28 : vector<8x64xf32>
    %30 = arith.mulf %23, %29 : vector<8x64xf32>
    %31 = tpu.iota {dimensions = array<i32: 1>} : vector<8x64xi32>
    %c32_i32 = arith.constant 32 : i32
    %32 = vector.broadcast %c32_i32 : i32 to vector<8x64xi32>
    %33 = arith.cmpi slt, %31, %32 : vector<8x64xi32>
    %cst_14 = arith.constant 0.000000e+00 : f32
    %34 = vector.broadcast %cst_14 : f32 to vector<8x64xf32>
    %35 = arith.select %33, %28, %34 : vector<8x64xi1>, vector<8x64xf32>
    %cst_15 = arith.constant 0.000000e+00 : f32
    %36 = vector.broadcast %cst_15 : f32 to vector<8x64xf32>
    %37 = arith.select %33, %30, %36 : vector<8x64xi1>, vector<8x64xf32>
    %c8 = arith.constant 8 : index
    %c0_16 = arith.constant 0 : index
    %38 = vector.load %arg7[%c8, %c0_16] : memref<72x256xf32, #tpu.memory_space<vmem>>, vector<8x256xf32>
    %cst_17 = arith.constant dense<0.000000e+00> : vector<8x256xf32>
    %39 = tpu.matmul %37, %7, %cst_17 {dimension_numbers = #tpu.dot_dimension_numbers<[1], [0], [0], [1], [0, 0, 1, 1], [], []>} : vector<8x64xf32>, vector<64x256xf32>, vector<8x256xf32> -> vector<8x256xf32>
    %40 = arith.addf %38, %39 : vector<8x256xf32>
    %41 = vector.extract_strided_slice %40 {offsets = [0, 0], sizes = [8, 128], strides = [1, 1]} : vector<8x256xf32> to vector<8x128xf32>
    %42 = arith.negf %41 : vector<8x128xf32>
    %43 = math.exp %42 : vector<8x128xf32>
    %cst_18 = arith.constant 1.000000e+00 : f32
    %44 = vector.broadcast %cst_18 : f32 to vector<8x128xf32>
    %45 = arith.addf %44, %43 : vector<8x128xf32>
    %46 = arith.divf %44, %45 : vector<8x128xf32>
    %47 = vector.extract_strided_slice %40 {offsets = [0, 128], sizes = [8, 64], strides = [1, 1]} : vector<8x256xf32> to vector<8x64xf32>
    %48 = math.tanh %47 : vector<8x64xf32>
    %49 = vector.extract_strided_slice %40 {offsets = [0, 192], sizes = [8, 64], strides = [1, 1]} : vector<8x256xf32> to vector<8x64xf32>
    %50 = arith.negf %49 : vector<8x64xf32>
    %51 = math.exp %50 : vector<8x64xf32>
    %cst_19 = arith.constant 1.000000e+00 : f32
    %52 = vector.broadcast %cst_19 : f32 to vector<8x64xf32>
    %53 = arith.addf %52, %51 : vector<8x64xf32>
    %54 = arith.divf %52, %53 : vector<8x64xf32>
    %55 = vector.extract_strided_slice %46 {offsets = [0, 64], sizes = [8, 64], strides = [1, 1]} : vector<8x128xf32> to vector<8x64xf32>
    %56 = arith.mulf %55, %35 : vector<8x64xf32>
    %57 = vector.extract_strided_slice %46 {offsets = [0, 0], sizes = [8, 64], strides = [1, 1]} : vector<8x128xf32> to vector<8x64xf32>
    %58 = arith.mulf %57, %48 : vector<8x64xf32>
    %59 = arith.addf %56, %58 : vector<8x64xf32>
    %60 = math.tanh %59 : vector<8x64xf32>
    %61 = arith.mulf %54, %60 : vector<8x64xf32>
    %62 = vector.extract_strided_slice %61 {offsets = [0, 32], sizes = [8, 32], strides = [1, 1]} : vector<8x64xf32> to vector<8x32xf32>
    %c0_20 = arith.constant 0 : index
    %c0_21 = arith.constant 0 : index
    %63 = vector.load %arg8[%c0_20, %c0_21] : memref<8x256xf32, #tpu.memory_space<vmem>>, vector<8x32xf32>
    tpu.vector_store %arg8[%c0_20, %c0_21], %62 {strides = array<i32>} : memref<8x256xf32, #tpu.memory_space<vmem>>, vector<8x32xf32>,
    %c16 = arith.constant 16 : index
    %c0_22 = arith.constant 0 : index
    %64 = vector.load %arg7[%c16, %c0_22] : memref<72x256xf32, #tpu.memory_space<vmem>>, vector<8x256xf32>
    %cst_23 = arith.constant dense<0.000000e+00> : vector<8x256xf32>
    %65 = tpu.matmul %61, %7, %cst_23 {dimension_numbers = #tpu.dot_dimension_numbers<[1], [0], [0], [1], [0, 0, 1, 1], [], []>} : vector<8x64xf32>, vector<64x256xf32>, vector<8x256xf32> -> vector<8x256xf32>
    %66 = arith.addf %64, %65 : vector<8x256xf32>
    %67 = vector.extract_strided_slice %66 {offsets = [0, 0], sizes = [8, 128], strides = [1, 1]} : vector<8x256xf32> to vector<8x128xf32>
    %68 = arith.negf %67 : vector<8x128xf32>
    %69 = math.exp %68 : vector<8x128xf32>
    %cst_24 = arith.constant 1.000000e+00 : f32
    %70 = vector.broadcast %cst_24 : f32 to vector<8x128xf32>
    %71 = arith.addf %70, %69 : vector<8x128xf32>
    %72 = arith.divf %70, %71 : vector<8x128xf32>
    %73 = vector.extract_strided_slice %66 {offsets = [0, 128], sizes = [8, 64], strides = [1, 1]} : vector<8x256xf32> to vector<8x64xf32>
    %74 = math.tanh %73 : vector<8x64xf32>
    %75 = vector.extract_strided_slice %66 {offsets = [0, 192], sizes = [8, 64], strides = [1, 1]} : vector<8x256xf32> to vector<8x64xf32>
    %76 = arith.negf %75 : vector<8x64xf32>
    %77 = math.exp %76 : vector<8x64xf32>
    %cst_25 = arith.constant 1.000000e+00 : f32
    %78 = vector.broadcast %cst_25 : f32 to vector<8x64xf32>
    %79 = arith.addf %78, %77 : vector<8x64xf32>
    %80 = arith.divf %78, %79 : vector<8x64xf32>
    %81 = vector.extract_strided_slice %72 {offsets = [0, 64], sizes = [8, 64], strides = [1, 1]} : vector<8x128xf32> to vector<8x64xf32>
    %82 = arith.mulf %81, %59 : vector<8x64xf32>
    %83 = vector.extract_strided_slice %72 {offsets = [0, 0], sizes = [8, 64], strides = [1, 1]} : vector<8x128xf32> to vector<8x64xf32>
    %84 = arith.mulf %83, %74 : vector<8x64xf32>
    %85 = arith.addf %82, %84 : vector<8x64xf32>
    %86 = math.tanh %85 : vector<8x64xf32>
    %87 = arith.mulf %80, %86 : vector<8x64xf32>
    %88 = vector.extract_strided_slice %87 {offsets = [0, 32], sizes = [8, 32], strides = [1, 1]} : vector<8x64xf32> to vector<8x32xf32>
    %c0_26 = arith.constant 0 : index
    %c32 = arith.constant 32 : index
    %89 = vector.load %arg8[%c0_26, %c32] : memref<8x256xf32, #tpu.memory_space<vmem>>, vector<8x32xf32>
    tpu.vector_store %arg8[%c0_26, %c32], %88 {strides = array<i32>} : memref<8x256xf32, #tpu.memory_space<vmem>>, vector<8x32xf32>,
    %c24 = arith.constant 24 : index
    %c0_27 = arith.constant 0 : index
    %90 = vector.load %arg7[%c24, %c0_27] : memref<72x256xf32, #tpu.memory_space<vmem>>, vector<8x256xf32>
    %cst_28 = arith.constant dense<0.000000e+00> : vector<8x256xf32>
    %91 = tpu.matmul %87, %7, %cst_28 {dimension_numbers = #tpu.dot_dimension_numbers<[1], [0], [0], [1], [0, 0, 1, 1], [], []>} : vector<8x64xf32>, vector<64x256xf32>, vector<8x256xf32> -> vector<8x256xf32>
    %92 = arith.addf %90, %91 : vector<8x256xf32>
    %93 = vector.extract_strided_slice %92 {offsets = [0, 0], sizes = [8, 128], strides = [1, 1]} : vector<8x256xf32> to vector<8x128xf32>
    %94 = arith.negf %93 : vector<8x128xf32>
    %95 = math.exp %94 : vector<8x128xf32>
    %cst_29 = arith.constant 1.000000e+00 : f32
    %96 = vector.broadcast %cst_29 : f32 to vector<8x128xf32>
    %97 = arith.addf %96, %95 : vector<8x128xf32>
    %98 = arith.divf %96, %97 : vector<8x128xf32>
    %99 = vector.extract_strided_slice %92 {offsets = [0, 128], sizes = [8, 64], strides = [1, 1]} : vector<8x256xf32> to vector<8x64xf32>
    %100 = math.tanh %99 : vector<8x64xf32>
    %101 = vector.extract_strided_slice %92 {offsets = [0, 192], sizes = [8, 64], strides = [1, 1]} : vector<8x256xf32> to vector<8x64xf32>
    %102 = arith.negf %101 : vector<8x64xf32>
    %103 = math.exp %102 : vector<8x64xf32>
    %cst_30 = arith.constant 1.000000e+00 : f32
    %104 = vector.broadcast %cst_30 : f32 to vector<8x64xf32>
    %105 = arith.addf %104, %103 : vector<8x64xf32>
    %106 = arith.divf %104, %105 : vector<8x64xf32>
    %107 = vector.extract_strided_slice %98 {offsets = [0, 64], sizes = [8, 64], strides = [1, 1]} : vector<8x128xf32> to vector<8x64xf32>
    %108 = arith.mulf %107, %85 : vector<8x64xf32>
    %109 = vector.extract_strided_slice %98 {offsets = [0, 0], sizes = [8, 64], strides = [1, 1]} : vector<8x128xf32> to vector<8x64xf32>
    %110 = arith.mulf %109, %100 : vector<8x64xf32>
    %111 = arith.addf %108, %110 : vector<8x64xf32>
    %112 = math.tanh %111 : vector<8x64xf32>
    %113 = arith.mulf %106, %112 : vector<8x64xf32>
    %114 = vector.extract_strided_slice %113 {offsets = [0, 32], sizes = [8, 32], strides = [1, 1]} : vector<8x64xf32> to vector<8x32xf32>
    %c0_31 = arith.constant 0 : index
    %c64 = arith.constant 64 : index
    %115 = vector.load %arg8[%c0_31, %c64] : memref<8x256xf32, #tpu.memory_space<vmem>>, vector<8x32xf32>
    tpu.vector_store %arg8[%c0_31, %c64], %114 {strides = array<i32>} : memref<8x256xf32, #tpu.memory_space<vmem>>, vector<8x32xf32>,
    %c32_32 = arith.constant 32 : index
    %c0_33 = arith.constant 0 : index
    %116 = vector.load %arg7[%c32_32, %c0_33] : memref<72x256xf32, #tpu.memory_space<vmem>>, vector<8x256xf32>
    %cst_34 = arith.constant dense<0.000000e+00> : vector<8x256xf32>
    %117 = tpu.matmul %113, %7, %cst_34 {dimension_numbers = #tpu.dot_dimension_numbers<[1], [0], [0], [1], [0, 0, 1, 1], [], []>} : vector<8x64xf32>, vector<64x256xf32>, vector<8x256xf32> -> vector<8x256xf32>
    %118 = arith.addf %116, %117 : vector<8x256xf32>
    %119 = vector.extract_strided_slice %118 {offsets = [0, 0], sizes = [8, 128], strides = [1, 1]} : vector<8x256xf32> to vector<8x128xf32>
    %120 = arith.negf %119 : vector<8x128xf32>
    %121 = math.exp %120 : vector<8x128xf32>
    %cst_35 = arith.constant 1.000000e+00 : f32
    %122 = vector.broadcast %cst_35 : f32 to vector<8x128xf32>
    %123 = arith.addf %122, %121 : vector<8x128xf32>
    %124 = arith.divf %122, %123 : vector<8x128xf32>
    %125 = vector.extract_strided_slice %118 {offsets = [0, 128], sizes = [8, 64], strides = [1, 1]} : vector<8x256xf32> to vector<8x64xf32>
    %126 = math.tanh %125 : vector<8x64xf32>
    %127 = vector.extract_strided_slice %118 {offsets = [0, 192], sizes = [8, 64], strides = [1, 1]} : vector<8x256xf32> to vector<8x64xf32>
    %128 = arith.negf %127 : vector<8x64xf32>
    %129 = math.exp %128 : vector<8x64xf32>
    %cst_36 = arith.constant 1.000000e+00 : f32
    %130 = vector.broadcast %cst_36 : f32 to vector<8x64xf32>
    %131 = arith.addf %130, %129 : vector<8x64xf32>
    %132 = arith.divf %130, %131 : vector<8x64xf32>
    %133 = vector.extract_strided_slice %124 {offsets = [0, 64], sizes = [8, 64], strides = [1, 1]} : vector<8x128xf32> to vector<8x64xf32>
    %134 = arith.mulf %133, %111 : vector<8x64xf32>
    %135 = vector.extract_strided_slice %124 {offsets = [0, 0], sizes = [8, 64], strides = [1, 1]} : vector<8x128xf32> to vector<8x64xf32>
    %136 = arith.mulf %135, %126 : vector<8x64xf32>
    %137 = arith.addf %134, %136 : vector<8x64xf32>
    %138 = math.tanh %137 : vector<8x64xf32>
    %139 = arith.mulf %132, %138 : vector<8x64xf32>
    %140 = vector.extract_strided_slice %139 {offsets = [0, 32], sizes = [8, 32], strides = [1, 1]} : vector<8x64xf32> to vector<8x32xf32>
    %c0_37 = arith.constant 0 : index
    %c96 = arith.constant 96 : index
    %141 = vector.load %arg8[%c0_37, %c96] : memref<8x256xf32, #tpu.memory_space<vmem>>, vector<8x32xf32>
    tpu.vector_store %arg8[%c0_37, %c96], %140 {strides = array<i32>} : memref<8x256xf32, #tpu.memory_space<vmem>>, vector<8x32xf32>,
    %c40 = arith.constant 40 : index
    %c0_38 = arith.constant 0 : index
    %142 = vector.load %arg7[%c40, %c0_38] : memref<72x256xf32, #tpu.memory_space<vmem>>, vector<8x256xf32>
    %cst_39 = arith.constant dense<0.000000e+00> : vector<8x256xf32>
    %143 = tpu.matmul %139, %7, %cst_39 {dimension_numbers = #tpu.dot_dimension_numbers<[1], [0], [0], [1], [0, 0, 1, 1], [], []>} : vector<8x64xf32>, vector<64x256xf32>, vector<8x256xf32> -> vector<8x256xf32>
    %144 = arith.addf %142, %143 : vector<8x256xf32>
    %145 = vector.extract_strided_slice %144 {offsets = [0, 0], sizes = [8, 128], strides = [1, 1]} : vector<8x256xf32> to vector<8x128xf32>
    %146 = arith.negf %145 : vector<8x128xf32>
    %147 = math.exp %146 : vector<8x128xf32>
    %cst_40 = arith.constant 1.000000e+00 : f32
    %148 = vector.broadcast %cst_40 : f32 to vector<8x128xf32>
    %149 = arith.addf %148, %147 : vector<8x128xf32>
    %150 = arith.divf %148, %149 : vector<8x128xf32>
    %151 = vector.extract_strided_slice %144 {offsets = [0, 128], sizes = [8, 64], strides = [1, 1]} : vector<8x256xf32> to vector<8x64xf32>
    %152 = math.tanh %151 : vector<8x64xf32>
    %153 = vector.extract_strided_slice %144 {offsets = [0, 192], sizes = [8, 64], strides = [1, 1]} : vector<8x256xf32> to vector<8x64xf32>
    %154 = arith.negf %153 : vector<8x64xf32>
    %155 = math.exp %154 : vector<8x64xf32>
    %cst_41 = arith.constant 1.000000e+00 : f32
    %156 = vector.broadcast %cst_41 : f32 to vector<8x64xf32>
    %157 = arith.addf %156, %155 : vector<8x64xf32>
    %158 = arith.divf %156, %157 : vector<8x64xf32>
    %159 = vector.extract_strided_slice %150 {offsets = [0, 64], sizes = [8, 64], strides = [1, 1]} : vector<8x128xf32> to vector<8x64xf32>
    %160 = arith.mulf %159, %137 : vector<8x64xf32>
    %161 = vector.extract_strided_slice %150 {offsets = [0, 0], sizes = [8, 64], strides = [1, 1]} : vector<8x128xf32> to vector<8x64xf32>
    %162 = arith.mulf %161, %152 : vector<8x64xf32>
    %163 = arith.addf %160, %162 : vector<8x64xf32>
    %164 = math.tanh %163 : vector<8x64xf32>
    %165 = arith.mulf %158, %164 : vector<8x64xf32>
    %166 = vector.extract_strided_slice %165 {offsets = [0, 32], sizes = [8, 32], strides = [1, 1]} : vector<8x64xf32> to vector<8x32xf32>
    %c0_42 = arith.constant 0 : index
    %c128 = arith.constant 128 : index
    %167 = vector.load %arg8[%c0_42, %c128] : memref<8x256xf32, #tpu.memory_space<vmem>>, vector<8x32xf32>
    tpu.vector_store %arg8[%c0_42, %c128], %166 {strides = array<i32>} : memref<8x256xf32, #tpu.memory_space<vmem>>, vector<8x32xf32>,
    %c48 = arith.constant 48 : index
    %c0_43 = arith.constant 0 : index
    %168 = vector.load %arg7[%c48, %c0_43] : memref<72x256xf32, #tpu.memory_space<vmem>>, vector<8x256xf32>
    %cst_44 = arith.constant dense<0.000000e+00> : vector<8x256xf32>
    %169 = tpu.matmul %165, %7, %cst_44 {dimension_numbers = #tpu.dot_dimension_numbers<[1], [0], [0], [1], [0, 0, 1, 1], [], []>} : vector<8x64xf32>, vector<64x256xf32>, vector<8x256xf32> -> vector<8x256xf32>
    %170 = arith.addf %168, %169 : vector<8x256xf32>
    %171 = vector.extract_strided_slice %170 {offsets = [0, 0], sizes = [8, 128], strides = [1, 1]} : vector<8x256xf32> to vector<8x128xf32>
    %172 = arith.negf %171 : vector<8x128xf32>
    %173 = math.exp %172 : vector<8x128xf32>
    %cst_45 = arith.constant 1.000000e+00 : f32
    %174 = vector.broadcast %cst_45 : f32 to vector<8x128xf32>
    %175 = arith.addf %174, %173 : vector<8x128xf32>
    %176 = arith.divf %174, %175 : vector<8x128xf32>
    %177 = vector.extract_strided_slice %170 {offsets = [0, 128], sizes = [8, 64], strides = [1, 1]} : vector<8x256xf32> to vector<8x64xf32>
    %178 = math.tanh %177 : vector<8x64xf32>
    %179 = vector.extract_strided_slice %170 {offsets = [0, 192], sizes = [8, 64], strides = [1, 1]} : vector<8x256xf32> to vector<8x64xf32>
    %180 = arith.negf %179 : vector<8x64xf32>
    %181 = math.exp %180 : vector<8x64xf32>
    %cst_46 = arith.constant 1.000000e+00 : f32
    %182 = vector.broadcast %cst_46 : f32 to vector<8x64xf32>
    %183 = arith.addf %182, %181 : vector<8x64xf32>
    %184 = arith.divf %182, %183 : vector<8x64xf32>
    %185 = vector.extract_strided_slice %176 {offsets = [0, 64], sizes = [8, 64], strides = [1, 1]} : vector<8x128xf32> to vector<8x64xf32>
    %186 = arith.mulf %185, %163 : vector<8x64xf32>
    %187 = vector.extract_strided_slice %176 {offsets = [0, 0], sizes = [8, 64], strides = [1, 1]} : vector<8x128xf32> to vector<8x64xf32>
    %188 = arith.mulf %187, %178 : vector<8x64xf32>
    %189 = arith.addf %186, %188 : vector<8x64xf32>
    %190 = math.tanh %189 : vector<8x64xf32>
    %191 = arith.mulf %184, %190 : vector<8x64xf32>
    %192 = vector.extract_strided_slice %191 {offsets = [0, 32], sizes = [8, 32], strides = [1, 1]} : vector<8x64xf32> to vector<8x32xf32>
    %c0_47 = arith.constant 0 : index
    %c160 = arith.constant 160 : index
    %193 = vector.load %arg8[%c0_47, %c160] : memref<8x256xf32, #tpu.memory_space<vmem>>, vector<8x32xf32>
    tpu.vector_store %arg8[%c0_47, %c160], %192 {strides = array<i32>} : memref<8x256xf32, #tpu.memory_space<vmem>>, vector<8x32xf32>,
    %c56 = arith.constant 56 : index
    %c0_48 = arith.constant 0 : index
    %194 = vector.load %arg7[%c56, %c0_48] : memref<72x256xf32, #tpu.memory_space<vmem>>, vector<8x256xf32>
    %cst_49 = arith.constant dense<0.000000e+00> : vector<8x256xf32>
    %195 = tpu.matmul %191, %7, %cst_49 {dimension_numbers = #tpu.dot_dimension_numbers<[1], [0], [0], [1], [0, 0, 1, 1], [], []>} : vector<8x64xf32>, vector<64x256xf32>, vector<8x256xf32> -> vector<8x256xf32>
    %196 = arith.addf %194, %195 : vector<8x256xf32>
    %197 = vector.extract_strided_slice %196 {offsets = [0, 0], sizes = [8, 128], strides = [1, 1]} : vector<8x256xf32> to vector<8x128xf32>
    %198 = arith.negf %197 : vector<8x128xf32>
    %199 = math.exp %198 : vector<8x128xf32>
    %cst_50 = arith.constant 1.000000e+00 : f32
    %200 = vector.broadcast %cst_50 : f32 to vector<8x128xf32>
    %201 = arith.addf %200, %199 : vector<8x128xf32>
    %202 = arith.divf %200, %201 : vector<8x128xf32>
    %203 = vector.extract_strided_slice %196 {offsets = [0, 128], sizes = [8, 64], strides = [1, 1]} : vector<8x256xf32> to vector<8x64xf32>
    %204 = math.tanh %203 : vector<8x64xf32>
    %205 = vector.extract_strided_slice %196 {offsets = [0, 192], sizes = [8, 64], strides = [1, 1]} : vector<8x256xf32> to vector<8x64xf32>
    %206 = arith.negf %205 : vector<8x64xf32>
    %207 = math.exp %206 : vector<8x64xf32>
    %cst_51 = arith.constant 1.000000e+00 : f32
    %208 = vector.broadcast %cst_51 : f32 to vector<8x64xf32>
    %209 = arith.addf %208, %207 : vector<8x64xf32>
    %210 = arith.divf %208, %209 : vector<8x64xf32>
    %211 = vector.extract_strided_slice %202 {offsets = [0, 64], sizes = [8, 64], strides = [1, 1]} : vector<8x128xf32> to vector<8x64xf32>
    %212 = arith.mulf %211, %189 : vector<8x64xf32>
    %213 = vector.extract_strided_slice %202 {offsets = [0, 0], sizes = [8, 64], strides = [1, 1]} : vector<8x128xf32> to vector<8x64xf32>
    %214 = arith.mulf %213, %204 : vector<8x64xf32>
    %215 = arith.addf %212, %214 : vector<8x64xf32>
    %216 = math.tanh %215 : vector<8x64xf32>
    %217 = arith.mulf %210, %216 : vector<8x64xf32>
    %218 = vector.extract_strided_slice %217 {offsets = [0, 32], sizes = [8, 32], strides = [1, 1]} : vector<8x64xf32> to vector<8x32xf32>
    %c0_52 = arith.constant 0 : index
    %c192 = arith.constant 192 : index
    %219 = vector.load %arg8[%c0_52, %c192] : memref<8x256xf32, #tpu.memory_space<vmem>>, vector<8x32xf32>
    tpu.vector_store %arg8[%c0_52, %c192], %218 {strides = array<i32>} : memref<8x256xf32, #tpu.memory_space<vmem>>, vector<8x32xf32>,
    %c64_53 = arith.constant 64 : index
    %c0_54 = arith.constant 0 : index
    %220 = vector.load %arg7[%c64_53, %c0_54] : memref<72x256xf32, #tpu.memory_space<vmem>>, vector<8x256xf32>
    %cst_55 = arith.constant dense<0.000000e+00> : vector<8x256xf32>
    %221 = tpu.matmul %217, %7, %cst_55 {dimension_numbers = #tpu.dot_dimension_numbers<[1], [0], [0], [1], [0, 0, 1, 1], [], []>} : vector<8x64xf32>, vector<64x256xf32>, vector<8x256xf32> -> vector<8x256xf32>
    %222 = arith.addf %220, %221 : vector<8x256xf32>
    %223 = vector.extract_strided_slice %222 {offsets = [0, 0], sizes = [8, 128], strides = [1, 1]} : vector<8x256xf32> to vector<8x128xf32>
    %224 = arith.negf %223 : vector<8x128xf32>
    %225 = math.exp %224 : vector<8x128xf32>
    %cst_56 = arith.constant 1.000000e+00 : f32
    %226 = vector.broadcast %cst_56 : f32 to vector<8x128xf32>
    %227 = arith.addf %226, %225 : vector<8x128xf32>
    %228 = arith.divf %226, %227 : vector<8x128xf32>
    %229 = vector.extract_strided_slice %222 {offsets = [0, 128], sizes = [8, 64], strides = [1, 1]} : vector<8x256xf32> to vector<8x64xf32>
    %230 = math.tanh %229 : vector<8x64xf32>
    %231 = vector.extract_strided_slice %222 {offsets = [0, 192], sizes = [8, 64], strides = [1, 1]} : vector<8x256xf32> to vector<8x64xf32>
    %232 = arith.negf %231 : vector<8x64xf32>
    %233 = math.exp %232 : vector<8x64xf32>
    %cst_57 = arith.constant 1.000000e+00 : f32
    %234 = vector.broadcast %cst_57 : f32 to vector<8x64xf32>
    %235 = arith.addf %234, %233 : vector<8x64xf32>
    %236 = arith.divf %234, %235 : vector<8x64xf32>
    %237 = vector.extract_strided_slice %228 {offsets = [0, 64], sizes = [8, 64], strides = [1, 1]} : vector<8x128xf32> to vector<8x64xf32>
    %238 = arith.mulf %237, %215 : vector<8x64xf32>
    %239 = vector.extract_strided_slice %228 {offsets = [0, 0], sizes = [8, 64], strides = [1, 1]} : vector<8x128xf32> to vector<8x64xf32>
    %240 = arith.mulf %239, %230 : vector<8x64xf32>
    %241 = arith.addf %238, %240 : vector<8x64xf32>
    %242 = math.tanh %241 : vector<8x64xf32>
    %243 = arith.mulf %236, %242 : vector<8x64xf32>
    %244 = vector.extract_strided_slice %243 {offsets = [0, 32], sizes = [8, 32], strides = [1, 1]} : vector<8x64xf32> to vector<8x32xf32>
    %c0_58 = arith.constant 0 : index
    %c224 = arith.constant 224 : index
    %245 = vector.load %arg8[%c0_58, %c224] : memref<8x256xf32, #tpu.memory_space<vmem>>, vector<8x32xf32>
    tpu.vector_store %arg8[%c0_58, %c224], %244 {strides = array<i32>} : memref<8x256xf32, #tpu.memory_space<vmem>>, vector<8x32xf32>,
    %c0_59 = arith.constant 0 : index
    %c0_60 = arith.constant 0 : index
    %246 = vector.load %arg8[%c0_59, %c0_60] : memref<8x256xf32, #tpu.memory_space<vmem>>, vector<8x256xf32>
    %c0_61 = arith.constant 0 : index
    %c0_62 = arith.constant 0 : index
    %247 = vector.load %arg4[%c0_61, %c0_62] : memref<256x8xf32, #tpu.memory_space<vmem>>, vector<256x8xf32>
    %cst_63 = arith.constant dense<0.000000e+00> : vector<8x8xf32>
    %248 = tpu.matmul %246, %247, %cst_63 {dimension_numbers = #tpu.dot_dimension_numbers<[1], [0], [0], [1], [0, 0, 1, 1], [], []>} : vector<8x256xf32>, vector<256x8xf32>, vector<8x8xf32> -> vector<8x8xf32>
    %c0_64 = arith.constant 0 : index
    %c0_65 = arith.constant 0 : index
    %249 = memref.load %arg5[%c0_64, %c0_65] : memref<1x1xf32, #tpu.memory_space<smem>>
    %250 = vector.broadcast %249 : f32 to vector<8x8xf32>
    %251 = arith.addf %248, %250 : vector<8x8xf32>
    %252 = vector.extract_strided_slice %251 {offsets = [0, 0], sizes = [2, 8], strides = [1, 1]} : vector<8x8xf32> to vector<2x8xf32>
    %cst_66 = arith.constant dense<0xFF800000> : vector<2xf32>
    %253 = vector.multi_reduction <maximumf>, %252, %cst_66 [1] : vector<2x8xf32> to vector<2xf32>
    %254 = vector.shape_cast %253 : vector<2xf32> to vector<2x1xf32>
    %255 = vector.broadcast %254 : vector<2x1xf32> to vector<2x8xf32>
    %256 = arith.subf %252, %255 : vector<2x8xf32>
    %257 = math.exp %256 : vector<2x8xf32>
    %cst_67 = arith.constant dense<0.000000e+00> : vector<2xf32>
    %258 = vector.multi_reduction <add>, %257, %cst_67 [1] : vector<2x8xf32> to vector<2xf32>
    %259 = vector.shape_cast %258 : vector<2xf32> to vector<2x1xf32>
    %260 = vector.broadcast %259 : vector<2x1xf32> to vector<2x8xf32>
    %261 = arith.divf %257, %260 : vector<2x8xf32>
    %c0_68 = arith.constant 0 : index
    %c0_69 = arith.constant 0 : index
    %262 = vector.load %arg6[%c0_68, %c0_69] : memref<2x8xf32, #tpu.memory_space<vmem>>, vector<2x8xf32>
    tpu.vector_store %arg6[%c0_68, %c0_69], %261 {strides = array<i32>} : memref<2x8xf32, #tpu.memory_space<vmem>>, vector<2x8xf32>,
    return
  }
}

</mosaic_0001>

<llo_original>
// kernel: sequence_forward.1
$region0: #{sequence_forward.1}
  #allocation0 [shape = 'u32[]', space=smem, size = 0x4, offset = 0x4, fixed_abs, tag = 'smem constant byte address 0x4 - core index']
  #allocation1 [shape = 'u32[144,128]{1,0:T(1,128)}', space=vmem, size = 0x12000, scoped, tag = 'internal scratch']
  #allocation2 [shape = 'f32[72,256]{1,0:T(8,128)}', space=vmem, size = 0x12000, scoped, tag = 'scratch operand']
  #allocation3 [shape = 'f32[8,256]{1,0:T(8,128)}', space=vmem, size = 0x2000, scoped, tag = 'scratch operand']
  #allocation4 [shape = 'f32[1,1]{1,0:T(1,128)S(6)}', space=smem, size = 0x200, scoped, tag = 'scoped memory for sequence_forward.1']
  %s0 = inlined_call_operand.vmem [shape: f32[72,32], index: 0, kind: input, shape index: {}]
  %s1 = inlined_call_operand.vmem [shape: f32[32,256], index: 1, kind: input, shape index: {}]
  %s2 = inlined_call_operand.vmem [shape: f32[1,256], index: 2, kind: input, shape index: {}]
  %s3 = inlined_call_operand.vmem [shape: f32[64,256], index: 3, kind: input, shape index: {}]
  %s4 = inlined_call_operand.vmem [shape: f32[256,8], index: 4, kind: input, shape index: {}]
  %s5 = inlined_call_operand.<no memory space> [shape: f32[1,1], index: 5, kind: input, shape index: {}]
  %s6 = inlined_call_operand.hbm [shape: f32[2,8], index: 6, kind: output, shape index: {}]
  %s7 = sld [smem:[#allocation0]]
  $region34: #{sequence_forward.1} parent=0
    _
  %s9 = ssub.s32 1, %s7
  %s10 = scalar_select 0, %s9, %s7
  %11 = sst [smem:[#allocation4]] %s5
  $region1: #{sequence_forward.1} parent=0
    #allocation5 [shape = 'u8[1024]{0}', space=vmem, size = 0x400, scoped, tag = 'output window, operand 0, single buffered']
    #allocation6 [shape = 's32[1]{0}', space=sflag, size = 0x4, scoped, tag = 'scoped memory for sequence_forward.1']
    %12 = vsyncpa [#allocation6], 0
    // Predicated region
    $region2: #{sequence_forward.1} parent=1 // pred_check
      _
    $region3: #{sequence_forward.1} parent=1 // pred_check_branch
      %14 = sbr.rel (0) target = $region5
    $region4: #{sequence_forward.1} parent=1 // pred_region
      _
    $region5: #{sequence_forward.1} parent=1 // pred_fallthru
      _
    // Predicated region
    $region6: #{sequence_forward.1} parent=1 // pred_check
      _
    $region7: #{sequence_forward.1} parent=1 // pred_check_branch
      %16 = sbr.rel (0) target = $region9
    $region8: #{sequence_forward.1} parent=1 // pred_region
      _
    $region9: #{sequence_forward.1} parent=1 // pred_fallthru
      _
    // Predicated region
    $region10: #{sequence_forward.1} parent=1 // pred_check
      _
    $region11: #{sequence_forward.1} parent=1 // pred_check_branch
      %18 = sbr.rel (0) target = $region13
    $region12: #{sequence_forward.1} parent=1 // pred_region
      _
    $region13: #{sequence_forward.1} parent=1 // pred_fallthru
      _
    // Predicated region
    $region14: #{sequence_forward.1} parent=1 // pred_check
      _
    $region15: #{sequence_forward.1} parent=1 // pred_check_branch
      %20 = sbr.rel (0) target = $region17
    $region16: #{sequence_forward.1} parent=1 // pred_region
      _
    $region17: #{sequence_forward.1} parent=1 // pred_fallthru
      _
    // Predicated region
    $region18: #{sequence_forward.1} parent=1 // pred_check
      _
    $region19: #{sequence_forward.1} parent=1 // pred_check_branch
      %22 = sbr.rel (0) target = $region21
    $region20: #{sequence_forward.1} parent=1 // pred_region
      _
    $region21: #{sequence_forward.1} parent=1 // pred_fallthru
      _
    // Predicated region
    $region22: #{sequence_forward.1} parent=1 // pred_check
      _
    $region23: #{sequence_forward.1} parent=1 // pred_check_branch
      %24 = sbr.rel (0) target = $region25
    $region24: #{sequence_forward.1} parent=1 // pred_region
      _
    $region25: #{sequence_forward.1} parent=1 // pred_fallthru
      _
    %v25 = vld [vmem:[%s0] sm:$0xff]
    %v26 = vld [vmem:[%s0 + $0x8] sm:$0xff]
    %v27 = vld [vmem:[%s0 + $0x10] sm:$0xff]
    %v28 = vld [vmem:[%s0 + $0x18] sm:$0xff]
    %v29 = vld [vmem:[%s0 + $0x20] sm:$0xff]
    %v30 = vld [vmem:[%s0 + $0x28] sm:$0xff]
    %v31 = vld [vmem:[%s0 + $0x30] sm:$0xff]
    %v32 = vld [vmem:[%s0 + $0x38] sm:$0xff]
    %v33 = vld [vmem:[%s0 + $0x40] sm:$0xff]
    %v34 = vld [vmem:[%s1] sm:$0xff]
    %v35 = vld [vmem:[%s1 + $0x8] sm:$0xff]
    %v36 = vld [vmem:[%s1 + $0x10] sm:$0xff]
    %v37 = vld [vmem:[%s1 + $0x18] sm:$0xff]
    %v38 = vld [vmem:[%s1 + $0x20] sm:$0xff]
    %v39 = vld [vmem:[%s1 + $0x28] sm:$0xff]
    %v40 = vld [vmem:[%s1 + $0x30] sm:$0xff]
    %v41 = vld [vmem:[%s1 + $0x38] sm:$0xff]
    %v42 = vld [vmem:[%s2] sm:$0x3]
    %v44 = vlaneseq
    %v45 = vshrl.u32 %v44, 7
    %v46 = vsub.s32 0, %v45
    %v47 = vrot.slane %v42, %v46
    %v48 = vlaneseq
    %v49 = vshrl.u32 %v48, 7
    %v50 = vsub.s32 1, %v49
    %v51 = vrot.slane %v42, %v50
    %vm54 = vcmask 261120
    %v56 = vsel %vm54, %v25, 0
    %v59 = vsel %vm54, %v26, 0
    %v62 = vsel %vm54, %v27, 0
    %v65 = vsel %vm54, %v28, 0
    %v68 = vsel %vm54, %v29, 0
    %v71 = vsel %vm54, %v30, 0
    %v74 = vsel %vm54, %v31, 0
    %v77 = vsel %vm54, %v32, 0
    %v80 = vsel %vm54, %v33, 0
    %82 = vmatprep.subr.mxu0 %v35
    %83 = vmatpush1.msra.mxu0 %v34
    %84 = vmatprep.subr.mxu0 %v37
    %85 = vmatpush1.msra.mxu0 %v36
    %86 = vmatprep.subr.mxu0 %v39
    %87 = vmatpush1.msra.mxu0 %v38
    %88 = vmatprep.subr.mxu0 %v41
    %89 = vmatpush1.msra.mxu0 %v40
    %90 = vmatprep.subr.mxu0 0.0
    %91 = vmatpush1.msra.mxu0 0.0
    %92 = vmatprep.subr.mxu0 0.0
    %93 = vmatpush1.msra.mxu0 0.0
    %94 = vmatprep.subr.mxu0 0.0
    %95 = vmatpush1.msra.mxu0 0.0
    %96 = vmatprep.subr.mxu0 0.0
    %97 = vmatpush1.msra.mxu0 0.0
    %98 = vmatprep.subr.mxu0 0.0
    %99 = vmatpush1.msra.mxu0 0.0
    %100 = vmatprep.subr.mxu0 0.0
    %101 = vmatpush1.msra.mxu0 0.0
    %102 = vmatprep.subr.mxu0 0.0
    %103 = vmatpush1.msra.mxu0 0.0
    %104 = vmatprep.subr.mxu0 0.0
    %105 = vmatpush1.msra.mxu0 0.0
    %106 = vmatprep.subr.mxu0 0.0
    %107 = vmatpush1.msra.mxu0 0.0
    %108 = vmatprep.subr.mxu0 0.0
    %109 = vmatpush1.msra.mxu0 0.0
    %110 = vmatprep.subr.mxu0 0.0
    %111 = vmatpush1.msra.mxu0 0.0
    %112 = vmatprep.subr.mxu0 0.0
    %113 = vmatpush1.msra.mxu0 0.0
    %114 = vmatprep.subr.mxu0 0.0
    %115 = vmatpush1.msra.mxu0 0.0
    %116 = vmatprep.subr.mxu0 0.0
    %117 = vmatpush1.msra.mxu0 0.0
    %118 = vmatprep.subr.mxu0 0.0
    %119 = vmatpush1.msra.mxu0 0.0
    %120 = vmatprep.subr.mxu0 0.0
    %121 = vmatpush1.msra.mxu0 0.0
    %122 = vmatprep.subr.mxu0 0.0
    %123 = vmatpush1.msra.mxu0 0.0
    %124 = vmatprep.subr.mxu0 0.0
    %125 = vmatpush1.msra.mxu0 0.0
    %126 = vmatprep.subr.mxu0 0.0
    %127 = vmatpush1.msra.mxu0 0.0
    %128 = vmatprep.subr.mxu0 0.0
    %129 = vmatpush1.msra.mxu0 0.0
    %130 = vmatprep.subr.mxu0 0.0
    %131 = vmatpush1.msra.mxu0 0.0
    %132 = vmatprep.subr.mxu0 0.0
    %133 = vmatpush1.msra.mxu0 0.0
    %134 = vmatprep.subr.mxu0 0.0
    %135 = vmatpush1.msra.mxu0 0.0
    %136 = vmatprep.subr.mxu0 0.0
    %137 = vmatpush1.msra.mxu0 0.0
    %138 = vmatprep.subr.mxu0 0.0
    %139 = vmatpush1.msra.mxu0 0.0
    %140 = vmatprep.subr.mxu0 0.0
    %141 = vmatpush1.msra.mxu0 0.0
    %142 = vmatprep.subr.mxu0 0.0
    %143 = vmatpush1.msra.mxu0 0.0
    %144 = vmatprep.subr.mxu0 0.0
    %145 = vmatpush1.msra.mxu0 0.0
    %146 = vmatprep.mubr.f32.mxu0 0.0
    %147 = vmatmul.mubr.f32.gmra.mrb[0].mxu0 %v56
    %v148 = vpop.f32.mrb[0].mxu0
    %v149 = vadd.f32 %v47, %v148
    %v150 = vpop.f32.mrb[0].mxu0
    %v151 = vadd.f32 %v51, %v150
    %152 = vmatprep.mubr.f32.mxu0 0.0
    %153 = vmatmul.mubr.f32.gmra.mrb[0].mxu0 %v59
    %v154 = vpop.f32.mrb[0].mxu0
    %v155 = vadd.f32 %v47, %v154
    %v156 = vpop.f32.mrb[0].mxu0
    %v157 = vadd.f32 %v51, %v156
    %158 = vmatprep.mubr.f32.mxu0 0.0
    %159 = vmatmul.mubr.f32.gmra.mrb[0].mxu0 %v62
    %v160 = vpop.f32.mrb[0].mxu0
    %v161 = vadd.f32 %v47, %v160
    %v162 = vpop.f32.mrb[0].mxu0
    %v163 = vadd.f32 %v51, %v162
    %164 = vmatprep.mubr.f32.mxu0 0.0
    %165 = vmatmul.mubr.f32.gmra.mrb[0].mxu0 %v65
    %v166 = vpop.f32.mrb[0].mxu0
    %v167 = vadd.f32 %v47, %v166
    %v168 = vpop.f32.mrb[0].mxu0
    %v169 = vadd.f32 %v51, %v168
    %170 = vmatprep.mubr.f32.mxu0 0.0
    %171 = vmatmul.mubr.f32.gmra.mrb[0].mxu0 %v68
    %v172 = vpop.f32.mrb[0].mxu0
    %v173 = vadd.f32 %v47, %v172
    %v174 = vpop.f32.mrb[0].mxu0
    %v175 = vadd.f32 %v51, %v174
    %176 = vmatprep.mubr.f32.mxu0 0.0
    %177 = vmatmul.mubr.f32.gmra.mrb[0].mxu0 %v71
    %v178 = vpop.f32.mrb[0].mxu0
    %v179 = vadd.f32 %v47, %v178
    %v180 = vpop.f32.mrb[0].mxu0
    %v181 = vadd.f32 %v51, %v180
    %182 = vmatprep.mubr.f32.mxu0 0.0
    %183 = vmatmul.mubr.f32.gmra.mrb[0].mxu0 %v74
    %v184 = vpop.f32.mrb[0].mxu0
    %v185 = vadd.f32 %v47, %v184
    %v186 = vpop.f32.mrb[0].mxu0
    %v187 = vadd.f32 %v51, %v186
    %188 = vmatprep.mubr.f32.mxu0 0.0
    %189 = vmatmul.mubr.f32.gmra.mrb[0].mxu0 %v77
    %v190 = vpop.f32.mrb[0].mxu0
    %v191 = vadd.f32 %v47, %v190
    %v192 = vpop.f32.mrb[0].mxu0
    %v193 = vadd.f32 %v51, %v192
    %194 = vmatprep.mubr.f32.mxu0 0.0
    %195 = vmatmul.mubr.f32.gmra.mrb[0].mxu0 %v80
    %v196 = vpop.f32.mrb[0].mxu0
    %v197 = vadd.f32 %v47, %v196
    %v198 = vpop.f32.mrb[0].mxu0
    %v199 = vadd.f32 %v51, %v198
    %200 = vdwg.mxu0
    %201 = vst [vmem:[#allocation2] sm:$0xff] %v149
    %202 = vst [vmem:[#allocation2 + $0x8] sm:$0xff] %v151
    %203 = vst [vmem:[#allocation2 + $0x10] sm:$0xff] %v155
    %204 = vst [vmem:[#allocation2 + $0x18] sm:$0xff] %v157
    %205 = vst [vmem:[#allocation2 + $0x20] sm:$0xff] %v161
    %206 = vst [vmem:[#allocation2 + $0x28] sm:$0xff] %v163
    %207 = vst [vmem:[#allocation2 + $0x30] sm:$0xff] %v167
    %208 = vst [vmem:[#allocation2 + $0x38] sm:$0xff] %v169
    %209 = vst [vmem:[#allocation2 + $0x40] sm:$0xff] %v173
    %210 = vst [vmem:[#allocation2 + $0x48] sm:$0xff] %v175
    %211 = vst [vmem:[#allocation2 + $0x50] sm:$0xff] %v179
    %212 = vst [vmem:[#allocation2 + $0x58] sm:$0xff] %v181
    %213 = vst [vmem:[#allocation2 + $0x60] sm:$0xff] %v185
    %214 = vst [vmem:[#allocation2 + $0x68] sm:$0xff] %v187
    %215 = vst [vmem:[#allocation2 + $0x70] sm:$0xff] %v191
    %216 = vst [vmem:[#allocation2 + $0x78] sm:$0xff] %v193
    %217 = vst [vmem:[#allocation2 + $0x80] sm:$0xff] %v197
    %218 = vst [vmem:[#allocation2 + $0x88] sm:$0xff] %v199
    %v219 = vld [vmem:[%s3] sm:$0xff]
    %v220 = vld [vmem:[%s3 + $0x8] sm:$0xff]
    %v221 = vld [vmem:[%s3 + $0x10] sm:$0xff]
    %v222 = vld [vmem:[%s3 + $0x18] sm:$0xff]
    %v223 = vld [vmem:[%s3 + $0x20] sm:$0xff]
    %v224 = vld [vmem:[%s3 + $0x28] sm:$0xff]
    %v225 = vld [vmem:[%s3 + $0x30] sm:$0xff]
    %v226 = vld [vmem:[%s3 + $0x38] sm:$0xff]
    %v227 = vld [vmem:[%s3 + $0x40] sm:$0xff]
    %v228 = vld [vmem:[%s3 + $0x48] sm:$0xff]
    %v229 = vld [vmem:[%s3 + $0x50] sm:$0xff]
    %v230 = vld [vmem:[%s3 + $0x58] sm:$0xff]
    %v231 = vld [vmem:[%s3 + $0x60] sm:$0xff]
    %v232 = vld [vmem:[%s3 + $0x68] sm:$0xff]
    %v233 = vld [vmem:[%s3 + $0x70] sm:$0xff]
    %v234 = vld [vmem:[%s3 + $0x78] sm:$0xff]
    %v235 = vld [vmem:[#allocation2] sm:$0xff]
    %v236 = vld [vmem:[#allocation2 + $0x8] sm:$0xff]
    %v237 = vxor.u32 %v235, 2147483648
    %v238 = vmul.f32 %v237, 1.442695
    %v239 = vpow.pop %v238
    %v240 = vadd.f32 %v239, 1.0
    %v241 = vrcp.pop %v240
    %v242 = vmul.f32 1.0, %v241
    %v243 = vtanh.pop %v236
    %v244 = vxor.u32 %v236, 2147483648
    %v245 = vmul.f32 %v244, 1.442695
    %v246 = vpow.pop %v245
    %v247 = vadd.f32 %v246, 1.0
    %v248 = vrcp.pop %v247
    %v249 = vmul.f32 1.0, %v248
    %v250 = vmul.f32 %v242, 0.0
    %v251 = vmul.f32 %v242, %v243
    %253 = vrot.lane.b32.xlu0 %v251, 64
    %v254 = vpop.permute.xlu0 %253
    %v256 = vadd.f32 %v250, %v254
    %v257 = vtanh.pop %v256
    %v258 = vmul.f32 %v249, %v257
    %v259 = vlaneseq
    %v260 = vand.u32 %v259, 127
    %vm261 = vcmp.lt.s32.totalorder %v260, 32
    %263 = vrot.lane.b32.xlu0 %v256, 64
    %v264 = vpop.permute.xlu0 %263
    %v266 = vsel %vm261, %v264, 0.0
    %268 = vrot.lane.b32.xlu0 %v258, 64
    %v269 = vpop.permute.xlu0 %268
    %v271 = vsel %vm261, %v269, 0.0
    %v272 = vld [vmem:[#allocation2 + $0x10] sm:$0xff]
    %v273 = vld [vmem:[#allocation2 + $0x18] sm:$0xff]
    %vm274 = vcmask 523264
    %v276 = vsel %vm274, %v271, 0
    %278 = vmatprep.subr.mxu0 %v220
    %279 = vmatpush1.msra.mxu0 %v219
    %280 = vmatprep.subr.mxu0 %v222
    %281 = vmatpush1.msra.mxu0 %v221
    %282 = vmatprep.subr.mxu0 %v224
    %283 = vmatpush1.msra.mxu0 %v223
    %284 = vmatprep.subr.mxu0 %v226
    %285 = vmatpush1.msra.mxu0 %v225
    %286 = vmatprep.subr.mxu0 %v228
    %287 = vmatpush1.msra.mxu0 %v227
    %288 = vmatprep.subr.mxu0 %v230
    %289 = vmatpush1.msra.mxu0 %v229
    %290 = vmatprep.subr.mxu0 %v232
    %291 = vmatpush1.msra.mxu0 %v231
    %292 = vmatprep.subr.mxu0 %v234
    %293 = vmatpush1.msra.mxu0 %v233
    %294 = vmatprep.subr.mxu0 0.0
    %295 = vmatpush1.msra.mxu0 0.0
    %296 = vmatprep.subr.mxu0 0.0
    %297 = vmatpush1.msra.mxu0 0.0
    %298 = vmatprep.subr.mxu0 0.0
    %299 = vmatpush1.msra.mxu0 0.0
    %300 = vmatprep.subr.mxu0 0.0
    %301 = vmatpush1.msra.mxu0 0.0
    %302 = vmatprep.subr.mxu0 0.0
    %303 = vmatpush1.msra.mxu0 0.0
    %304 = vmatprep.subr.mxu0 0.0
    %305 = vmatpush1.msra.mxu0 0.0
    %306 = vmatprep.subr.mxu0 0.0
    %307 = vmatpush1.msra.mxu0 0.0
    %308 = vmatprep.subr.mxu0 0.0
    %309 = vmatpush1.msra.mxu0 0.0
    %310 = vmatprep.subr.mxu0 0.0
    %311 = vmatpush1.msra.mxu0 0.0
    %312 = vmatprep.subr.mxu0 0.0
    %313 = vmatpush1.msra.mxu0 0.0
    %314 = vmatprep.subr.mxu0 0.0
    %315 = vmatpush1.msra.mxu0 0.0
    %316 = vmatprep.subr.mxu0 0.0
    %317 = vmatpush1.msra.mxu0 0.0
    %318 = vmatprep.subr.mxu0 0.0
    %319 = vmatpush1.msra.mxu0 0.0
    %320 = vmatprep.subr.mxu0 0.0
    %321 = vmatpush1.msra.mxu0 0.0
    %322 = vmatprep.subr.mxu0 0.0
    %323 = vmatpush1.msra.mxu0 0.0
    %324 = vmatprep.subr.mxu0 0.0
    %325 = vmatpush1.msra.mxu0 0.0
    %326 = vmatprep.subr.mxu0 0.0
    %327 = vmatpush1.msra.mxu0 0.0
    %328 = vmatprep.subr.mxu0 0.0
    %329 = vmatpush1.msra.mxu0 0.0
    %330 = vmatprep.subr.mxu0 0.0
    %331 = vmatpush1.msra.mxu0 0.0
    %332 = vmatprep.subr.mxu0 0.0
    %333 = vmatpush1.msra.mxu0 0.0
    %334 = vmatprep.subr.mxu0 0.0
    %335 = vmatpush1.msra.mxu0 0.0
    %336 = vmatprep.subr.mxu0 0.0
    %337 = vmatpush1.msra.mxu0 0.0
    %338 = vmatprep.subr.mxu0 0.0
    %339 = vmatpush1.msra.mxu0 0.0
    %340 = vmatprep.subr.mxu0 0.0
    %341 = vmatpush1.msra.mxu0 0.0
    %342 = vmatprep.mubr.f32.mxu0 0.0
    %343 = vmatmul.mubr.f32.gmra.mrb[0].mxu0 %v276
    %v344 = vpop.f32.mrb[0].mxu0
    %v345 = vadd.f32 0.0, %v344
    %v346 = vpop.f32.mrb[0].mxu0
    %v347 = vadd.f32 0.0, %v346
    %348 = vdwg.mxu0
    %v349 = vadd.f32 %v272, %v345
    %v350 = vadd.f32 %v273, %v347
    %v351 = vxor.u32 %v349, 2147483648
    %v352 = vmul.f32 %v351, 1.442695
    %v353 = vpow.pop %v352
    %v354 = vadd.f32 %v353, 1.0
    %v355 = vrcp.pop %v354
    %v356 = vmul.f32 1.0, %v355
    %v357 = vtanh.pop %v350
    %v358 = vxor.u32 %v350, 2147483648
    %v359 = vmul.f32 %v358, 1.442695
    %v360 = vpow.pop %v359
    %v361 = vadd.f32 %v360, 1.0
    %v362 = vrcp.pop %v361
    %v363 = vmul.f32 1.0, %v362
    %365 = vrot.lane.b32.xlu0 %v266, 64
    %v366 = vpop.permute.xlu0 %365
    %v368 = vmul.f32 %v356, %v366
    %v369 = vmul.f32 %v356, %v357
    %371 = vrot.lane.b32.xlu0 %v369, 64
    %v372 = vpop.permute.xlu0 %371
    %v374 = vadd.f32 %v368, %v372
    %v375 = vtanh.pop %v374
    %v376 = vmul.f32 %v363, %v375
    %378 = vrot.lane.b32.xlu0 %v376, 32
    %v379 = vpop.permute.xlu0 %378
    %381 = vst.msk [vmem:[#allocation3] sm:$0xff] %vm54, %v379
    %v382 = vld [vmem:[#allocation2 + $0x20] sm:$0xff]
    %v383 = vld [vmem:[#allocation2 + $0x28] sm:$0xff]
    %384 = vrot.lane.b32.xlu0 %v376, 64
    %v385 = vpop.permute.xlu0 %384
    %v386 = vsel %vm274, %v385, 0
    %388 = vmatprep.subr.mxu0 %v220
    %389 = vmatpush1.msra.mxu0 %v219
    %390 = vmatprep.subr.mxu0 %v222
    %391 = vmatpush1.msra.mxu0 %v221
    %392 = vmatprep.subr.mxu0 %v224
    %393 = vmatpush1.msra.mxu0 %v223
    %394 = vmatprep.subr.mxu0 %v226
    %395 = vmatpush1.msra.mxu0 %v225
    %396 = vmatprep.subr.mxu0 %v228
    %397 = vmatpush1.msra.mxu0 %v227
    %398 = vmatprep.subr.mxu0 %v230
    %399 = vmatpush1.msra.mxu0 %v229
    %400 = vmatprep.subr.mxu0 %v232
    %401 = vmatpush1.msra.mxu0 %v231
    %402 = vmatprep.subr.mxu0 %v234
    %403 = vmatpush1.msra.mxu0 %v233
    %404 = vmatprep.subr.mxu0 0.0
    %405 = vmatpush1.msra.mxu0 0.0
    %406 = vmatprep.subr.mxu0 0.0
    %407 = vmatpush1.msra.mxu0 0.0
    %408 = vmatprep.subr.mxu0 0.0
    %409 = vmatpush1.msra.mxu0 0.0
    %410 = vmatprep.subr.mxu0 0.0
    %411 = vmatpush1.msra.mxu0 0.0
    %412 = vmatprep.subr.mxu0 0.0
    %413 = vmatpush1.msra.mxu0 0.0
    %414 = vmatprep.subr.mxu0 0.0
    %415 = vmatpush1.msra.mxu0 0.0
    %416 = vmatprep.subr.mxu0 0.0
    %417 = vmatpush1.msra.mxu0 0.0
    %418 = vmatprep.subr.mxu0 0.0
    %419 = vmatpush1.msra.mxu0 0.0
    %420 = vmatprep.subr.mxu0 0.0
    %421 = vmatpush1.msra.mxu0 0.0
    %422 = vmatprep.subr.mxu0 0.0
    %423 = vmatpush1.msra.mxu0 0.0
    %424 = vmatprep.subr.mxu0 0.0
    %425 = vmatpush1.msra.mxu0 0.0
    %426 = vmatprep.subr.mxu0 0.0
    %427 = vmatpush1.msra.mxu0 0.0
    %428 = vmatprep.subr.mxu0 0.0
    %429 = vmatpush1.msra.mxu0 0.0
    %430 = vmatprep.subr.mxu0 0.0
    %431 = vmatpush1.msra.mxu0 0.0
    %432 = vmatprep.subr.mxu0 0.0
    %433 = vmatpush1.msra.mxu0 0.0
    %434 = vmatprep.subr.mxu0 0.0
    %435 = vmatpush1.msra.mxu0 0.0
    %436 = vmatprep.subr.mxu0 0.0
    %437 = vmatpush1.msra.mxu0 0.0
    %438 = vmatprep.subr.mxu0 0.0
    %439 = vmatpush1.msra.mxu0 0.0
    %440 = vmatprep.subr.mxu0 0.0
    %441 = vmatpush1.msra.mxu0 0.0
    %442 = vmatprep.subr.mxu0 0.0
    %443 = vmatpush1.msra.mxu0 0.0
    %444 = vmatprep.subr.mxu0 0.0
    %445 = vmatpush1.msra.mxu0 0.0
    %446 = vmatprep.subr.mxu0 0.0
    %447 = vmatpush1.msra.mxu0 0.0
    %448 = vmatprep.subr.mxu0 0.0
    %449 = vmatpush1.msra.mxu0 0.0
    %450 = vmatprep.subr.mxu0 0.0
    %451 = vmatpush1.msra.mxu0 0.0
    %452 = vmatprep.mubr.f32.mxu0 0.0
    %453 = vmatmul.mubr.f32.gmra.mrb[0].mxu0 %v386
    %v454 = vpop.f32.mrb[0].mxu0
    %v455 = vadd.f32 0.0, %v454
    %v456 = vpop.f32.mrb[0].mxu0
    %v457 = vadd.f32 0.0, %v456
    %458 = vdwg.mxu0
    %v459 = vadd.f32 %v382, %v455
    %v460 = vadd.f32 %v383, %v457
    %v461 = vxor.u32 %v459, 2147483648
    %v462 = vmul.f32 %v461, 1.442695
    %v463 = vpow.pop %v462
    %v464 = vadd.f32 %v463, 1.0
    %v465 = vrcp.pop %v464
    %v466 = vmul.f32 1.0, %v465
    %v467 = vtanh.pop %v460
    %v468 = vxor.u32 %v460, 2147483648
    %v469 = vmul.f32 %v468, 1.442695
    %v470 = vpow.pop %v469
    %v471 = vadd.f32 %v470, 1.0
    %v472 = vrcp.pop %v471
    %v473 = vmul.f32 1.0, %v472
    %v474 = vmul.f32 %v466, %v374
    %v475 = vmul.f32 %v466, %v467
    %477 = vrot.lane.b32.xlu0 %v475, 64
    %v478 = vpop.permute.xlu0 %477
    %v480 = vadd.f32 %v474, %v478
    %v481 = vtanh.pop %v480
    %v482 = vmul.f32 %v473, %v481
    %484 = vrot.lane.b32.xlu0 %v482, 64
    %v485 = vpop.permute.xlu0 %484
    %vm487 = vcmask 523520
    %488 = vst.msk [vmem:[#allocation3] sm:$0xff] %vm487, %v485
    %v489 = vld [vmem:[#allocation2 + $0x30] sm:$0xff]
    %v490 = vld [vmem:[#allocation2 + $0x38] sm:$0xff]
    %v491 = vsel %vm274, %v485, 0
    %493 = vmatprep.subr.mxu0 %v220
    %494 = vmatpush1.msra.mxu0 %v219
    %495 = vmatprep.subr.mxu0 %v222
    %496 = vmatpush1.msra.mxu0 %v221
    %497 = vmatprep.subr.mxu0 %v224
    %498 = vmatpush1.msra.mxu0 %v223
    %499 = vmatprep.subr.mxu0 %v226
    %500 = vmatpush1.msra.mxu0 %v225
    %501 = vmatprep.subr.mxu0 %v228
    %502 = vmatpush1.msra.mxu0 %v227
    %503 = vmatprep.subr.mxu0 %v230
    %504 = vmatpush1.msra.mxu0 %v229
    %505 = vmatprep.subr.mxu0 %v232
    %506 = vmatpush1.msra.mxu0 %v231
    %507 = vmatprep.subr.mxu0 %v234
    %508 = vmatpush1.msra.mxu0 %v233
    %509 = vmatprep.subr.mxu0 0.0
    %510 = vmatpush1.msra.mxu0 0.0
    %511 = vmatprep.subr.mxu0 0.0
    %512 = vmatpush1.msra.mxu0 0.0
    %513 = vmatprep.subr.mxu0 0.0
    %514 = vmatpush1.msra.mxu0 0.0
    %515 = vmatprep.subr.mxu0 0.0
    %516 = vmatpush1.msra.mxu0 0.0
    %517 = vmatprep.subr.mxu0 0.0
    %518 = vmatpush1.msra.mxu0 0.0
    %519 = vmatprep.subr.mxu0 0.0
    %520 = vmatpush1.msra.mxu0 0.0
    %521 = vmatprep.subr.mxu0 0.0
    %522 = vmatpush1.msra.mxu0 0.0
    %523 = vmatprep.subr.mxu0 0.0
    %524 = vmatpush1.msra.mxu0 0.0
    %525 = vmatprep.subr.mxu0 0.0
    %526 = vmatpush1.msra.mxu0 0.0
    %527 = vmatprep.subr.mxu0 0.0
    %528 = vmatpush1.msra.mxu0 0.0
    %529 = vmatprep.subr.mxu0 0.0
    %530 = vmatpush1.msra.mxu0 0.0
    %531 = vmatprep.subr.mxu0 0.0
    %532 = vmatpush1.msra.mxu0 0.0
    %533 = vmatprep.subr.mxu0 0.0
    %534 = vmatpush1.msra.mxu0 0.0
    %535 = vmatprep.subr.mxu0 0.0
    %536 = vmatpush1.msra.mxu0 0.0
    %537 = vmatprep.subr.mxu0 0.0
    %538 = vmatpush1.msra.mxu0 0.0
    %539 = vmatprep.subr.mxu0 0.0
    %540 = vmatpush1.msra.mxu0 0.0
    %541 = vmatprep.subr.mxu0 0.0
    %542 = vmatpush1.msra.mxu0 0.0
    %543 = vmatprep.subr.mxu0 0.0
    %544 = vmatpush1.msra.mxu0 0.0
    %545 = vmatprep.subr.mxu0 0.0
    %546 = vmatpush1.msra.mxu0 0.0
    %547 = vmatprep.subr.mxu0 0.0
    %548 = vmatpush1.msra.mxu0 0.0
    %549 = vmatprep.subr.mxu0 0.0
    %550 = vmatpush1.msra.mxu0 0.0
    %551 = vmatprep.subr.mxu0 0.0
    %552 = vmatpush1.msra.mxu0 0.0
    %553 = vmatprep.subr.mxu0 0.0
    %554 = vmatpush1.msra.mxu0 0.0
    %555 = vmatprep.subr.mxu0 0.0
    %556 = vmatpush1.msra.mxu0 0.0
    %557 = vmatprep.mubr.f32.mxu0 0.0
    %558 = vmatmul.mubr.f32.gmra.mrb[0].mxu0 %v491
    %v559 = vpop.f32.mrb[0].mxu0
    %v560 = vadd.f32 0.0, %v559
    %v561 = vpop.f32.mrb[0].mxu0
    %v562 = vadd.f32 0.0, %v561
    %563 = vdwg.mxu0
    %v564 = vadd.f32 %v489, %v560
    %v565 = vadd.f32 %v490, %v562
    %v566 = vxor.u32 %v564, 2147483648
    %v567 = vmul.f32 %v566, 1.442695
    %v568 = vpow.pop %v567
    %v569 = vadd.f32 %v568, 1.0
    %v570 = vrcp.pop %v569
    %v571 = vmul.f32 1.0, %v570
    %v572 = vtanh.pop %v565
    %v573 = vxor.u32 %v565, 2147483648
    %v574 = vmul.f32 %v573, 1.442695
    %v575 = vpow.pop %v574
    %v576 = vadd.f32 %v575, 1.0
    %v577 = vrcp.pop %v576
    %v578 = vmul.f32 1.0, %v577
    %v579 = vmul.f32 %v571, %v480
    %v580 = vmul.f32 %v571, %v572
    %582 = vrot.lane.b32.xlu0 %v580, 64
    %v583 = vpop.permute.xlu0 %582
    %v585 = vadd.f32 %v579, %v583
    %v586 = vtanh.pop %v585
    %v587 = vmul.f32 %v578, %v586
    %589 = vrot.lane.b32.xlu0 %v587, 96
    %v590 = vpop.permute.xlu0 %589
    %vm592 = vcmask 785920
    %593 = vst.msk [vmem:[#allocation3] sm:$0xff] %vm592, %v590
    %v594 = vld [vmem:[#allocation2 + $0x40] sm:$0xff]
    %v595 = vld [vmem:[#allocation2 + $0x48] sm:$0xff]
    %596 = vrot.lane.b32.xlu0 %v587, 64
    %v597 = vpop.permute.xlu0 %596
    %v598 = vsel %vm274, %v597, 0
    %600 = vmatprep.subr.mxu0 %v220
    %601 = vmatpush1.msra.mxu0 %v219
    %602 = vmatprep.subr.mxu0 %v222
    %603 = vmatpush1.msra.mxu0 %v221
    %604 = vmatprep.subr.mxu0 %v224
    %605 = vmatpush1.msra.mxu0 %v223
    %606 = vmatprep.subr.mxu0 %v226
    %607 = vmatpush1.msra.mxu0 %v225
    %608 = vmatprep.subr.mxu0 %v228
    %609 = vmatpush1.msra.mxu0 %v227
    %610 = vmatprep.subr.mxu0 %v230
    %611 = vmatpush1.msra.mxu0 %v229
    %612 = vmatprep.subr.mxu0 %v232
    %613 = vmatpush1.msra.mxu0 %v231
    %614 = vmatprep.subr.mxu0 %v234
    %615 = vmatpush1.msra.mxu0 %v233
    %616 = vmatprep.subr.mxu0 0.0
    %617 = vmatpush1.msra.mxu0 0.0
    %618 = vmatprep.subr.mxu0 0.0
    %619 = vmatpush1.msra.mxu0 0.0
    %620 = vmatprep.subr.mxu0 0.0
    %621 = vmatpush1.msra.mxu0 0.0
    %622 = vmatprep.subr.mxu0 0.0
    %623 = vmatpush1.msra.mxu0 0.0
    %624 = vmatprep.subr.mxu0 0.0
    %625 = vmatpush1.msra.mxu0 0.0
    %626 = vmatprep.subr.mxu0 0.0
    %627 = vmatpush1.msra.mxu0 0.0
    %628 = vmatprep.subr.mxu0 0.0
    %629 = vmatpush1.msra.mxu0 0.0
    %630 = vmatprep.subr.mxu0 0.0
    %631 = vmatpush1.msra.mxu0 0.0
    %632 = vmatprep.subr.mxu0 0.0
    %633 = vmatpush1.msra.mxu0 0.0
    %634 = vmatprep.subr.mxu0 0.0
    %635 = vmatpush1.msra.mxu0 0.0
    %636 = vmatprep.subr.mxu0 0.0
    %637 = vmatpush1.msra.mxu0 0.0
    %638 = vmatprep.subr.mxu0 0.0
    %639 = vmatpush1.msra.mxu0 0.0
    %640 = vmatprep.subr.mxu0 0.0
    %641 = vmatpush1.msra.mxu0 0.0
    %642 = vmatprep.subr.mxu0 0.0
    %643 = vmatpush1.msra.mxu0 0.0
    %644 = vmatprep.subr.mxu0 0.0
    %645 = vmatpush1.msra.mxu0 0.0
    %646 = vmatprep.subr.mxu0 0.0
    %647 = vmatpush1.msra.mxu0 0.0
    %648 = vmatprep.subr.mxu0 0.0
    %649 = vmatpush1.msra.mxu0 0.0
    %650 = vmatprep.subr.mxu0 0.0
    %651 = vmatpush1.msra.mxu0 0.0
    %652 = vmatprep.subr.mxu0 0.0
    %653 = vmatpush1.msra.mxu0 0.0
    %654 = vmatprep.subr.mxu0 0.0
    %655 = vmatpush1.msra.mxu0 0.0
    %656 = vmatprep.subr.mxu0 0.0
    %657 = vmatpush1.msra.mxu0 0.0
    %658 = vmatprep.subr.mxu0 0.0
    %659 = vmatpush1.msra.mxu0 0.0
    %660 = vmatprep.subr.mxu0 0.0
    %661 = vmatpush1.msra.mxu0 0.0
    %662 = vmatprep.subr.mxu0 0.0
    %663 = vmatpush1.msra.mxu0 0.0
    %664 = vmatprep.mubr.f32.mxu0 0.0
    %665 = vmatmul.mubr.f32.gmra.mrb[0].mxu0 %v598
    %v666 = vpop.f32.mrb[0].mxu0
    %v667 = vadd.f32 0.0, %v666
    %v668 = vpop.f32.mrb[0].mxu0
    %v669 = vadd.f32 0.0, %v668
    %670 = vdwg.mxu0
    %v671 = vadd.f32 %v594, %v667
    %v672 = vadd.f32 %v595, %v669
    %v673 = vxor.u32 %v671, 2147483648
    %v674 = vmul.f32 %v673, 1.442695
    %v675 = vpow.pop %v674
    %v676 = vadd.f32 %v675, 1.0
    %v677 = vrcp.pop %v676
    %v678 = vmul.f32 1.0, %v677
    %v679 = vtanh.pop %v672
    %v680 = vxor.u32 %v672, 2147483648
    %v681 = vmul.f32 %v680, 1.442695
    %v682 = vpow.pop %v681
    %v683 = vadd.f32 %v682, 1.0
    %v684 = vrcp.pop %v683
    %v685 = vmul.f32 1.0, %v684
    %v686 = vmul.f32 %v678, %v585
    %v687 = vmul.f32 %v678, %v679
    %689 = vrot.lane.b32.xlu0 %v687, 64
    %v690 = vpop.permute.xlu0 %689
    %v692 = vadd.f32 %v686, %v690
    %v693 = vtanh.pop %v692
    %v694 = vmul.f32 %v685, %v693
    %vm695 = vcmask 1048320
    %696 = vst.msk [vmem:[#allocation3] sm:$0xff] %vm695, %v694
    %v697 = vld [vmem:[#allocation2 + $0x50] sm:$0xff]
    %v698 = vld [vmem:[#allocation2 + $0x58] sm:$0xff]
    %700 = vrot.lane.b32.xlu0 %v694, 64
    %v701 = vpop.permute.xlu0 %700
    %v702 = vsel %vm274, %v701, 0
    %704 = vmatprep.subr.mxu0 %v220
    %705 = vmatpush1.msra.mxu0 %v219
    %706 = vmatprep.subr.mxu0 %v222
    %707 = vmatpush1.msra.mxu0 %v221
    %708 = vmatprep.subr.mxu0 %v224
    %709 = vmatpush1.msra.mxu0 %v223
    %710 = vmatprep.subr.mxu0 %v226
    %711 = vmatpush1.msra.mxu0 %v225
    %712 = vmatprep.subr.mxu0 %v228
    %713 = vmatpush1.msra.mxu0 %v227
    %714 = vmatprep.subr.mxu0 %v230
    %715 = vmatpush1.msra.mxu0 %v229
    %716 = vmatprep.subr.mxu0 %v232
    %717 = vmatpush1.msra.mxu0 %v231
    %718 = vmatprep.subr.mxu0 %v234
    %719 = vmatpush1.msra.mxu0 %v233
    %720 = vmatprep.subr.mxu0 0.0
    %721 = vmatpush1.msra.mxu0 0.0
    %722 = vmatprep.subr.mxu0 0.0
    %723 = vmatpush1.msra.mxu0 0.0
    %724 = vmatprep.subr.mxu0 0.0
    %725 = vmatpush1.msra.mxu0 0.0
    %726 = vmatprep.subr.mxu0 0.0
    %727 = vmatpush1.msra.mxu0 0.0
    %728 = vmatprep.subr.mxu0 0.0
    %729 = vmatpush1.msra.mxu0 0.0
    %730 = vmatprep.subr.mxu0 0.0
    %731 = vmatpush1.msra.mxu0 0.0
    %732 = vmatprep.subr.mxu0 0.0
    %733 = vmatpush1.msra.mxu0 0.0
    %734 = vmatprep.subr.mxu0 0.0
    %735 = vmatpush1.msra.mxu0 0.0
    %736 = vmatprep.subr.mxu0 0.0
    %737 = vmatpush1.msra.mxu0 0.0
    %738 = vmatprep.subr.mxu0 0.0
    %739 = vmatpush1.msra.mxu0 0.0
    %740 = vmatprep.subr.mxu0 0.0
    %741 = vmatpush1.msra.mxu0 0.0
    %742 = vmatprep.subr.mxu0 0.0
    %743 = vmatpush1.msra.mxu0 0.0
    %744 = vmatprep.subr.mxu0 0.0
    %745 = vmatpush1.msra.mxu0 0.0
    %746 = vmatprep.subr.mxu0 0.0
    %747 = vmatpush1.msra.mxu0 0.0
    %748 = vmatprep.subr.mxu0 0.0
    %749 = vmatpush1.msra.mxu0 0.0
    %750 = vmatprep.subr.mxu0 0.0
    %751 = vmatpush1.msra.mxu0 0.0
    %752 = vmatprep.subr.mxu0 0.0
    %753 = vmatpush1.msra.mxu0 0.0
    %754 = vmatprep.subr.mxu0 0.0
    %755 = vmatpush1.msra.mxu0 0.0
    %756 = vmatprep.subr.mxu0 0.0
    %757 = vmatpush1.msra.mxu0 0.0
    %758 = vmatprep.subr.mxu0 0.0
    %759 = vmatpush1.msra.mxu0 0.0
    %760 = vmatprep.subr.mxu0 0.0
    %761 = vmatpush1.msra.mxu0 0.0
    %762 = vmatprep.subr.mxu0 0.0
    %763 = vmatpush1.msra.mxu0 0.0
    %764 = vmatprep.subr.mxu0 0.0
    %765 = vmatpush1.msra.mxu0 0.0
    %766 = vmatprep.subr.mxu0 0.0
    %767 = vmatpush1.msra.mxu0 0.0
    %768 = vmatprep.mubr.f32.mxu0 0.0
    %769 = vmatmul.mubr.f32.gmra.mrb[0].mxu0 %v702
    %v770 = vpop.f32.mrb[0].mxu0
    %v771 = vadd.f32 0.0, %v770
    %v772 = vpop.f32.mrb[0].mxu0
    %v773 = vadd.f32 0.0, %v772
    %774 = vdwg.mxu0
    %v775 = vadd.f32 %v697, %v771
    %v776 = vadd.f32 %v698, %v773
    %v777 = vxor.u32 %v775, 2147483648
    %v778 = vmul.f32 %v777, 1.442695
    %v779 = vpow.pop %v778
    %v780 = vadd.f32 %v779, 1.0
    %v781 = vrcp.pop %v780
    %v782 = vmul.f32 1.0, %v781
    %v783 = vtanh.pop %v776
    %v784 = vxor.u32 %v776, 2147483648
    %v785 = vmul.f32 %v784, 1.442695
    %v786 = vpow.pop %v785
    %v787 = vadd.f32 %v786, 1.0
    %v788 = vrcp.pop %v787
    %v789 = vmul.f32 1.0, %v788
    %v790 = vmul.f32 %v782, %v692
    %v791 = vmul.f32 %v782, %v783
    %793 = vrot.lane.b32.xlu0 %v791, 64
    %v794 = vpop.permute.xlu0 %793
    %v796 = vadd.f32 %v790, %v794
    %v797 = vtanh.pop %v796
    %v798 = vmul.f32 %v789, %v797
    %800 = vrot.lane.b32.xlu0 %v798, 32
    %v801 = vpop.permute.xlu0 %800
    %803 = vst.msk [vmem:[#allocation3 + $0x8] sm:$0xff] %vm54, %v801
    %v804 = vld [vmem:[#allocation2 + $0x60] sm:$0xff]
    %v805 = vld [vmem:[#allocation2 + $0x68] sm:$0xff]
    %806 = vrot.lane.b32.xlu0 %v798, 64
    %v807 = vpop.permute.xlu0 %806
    %v808 = vsel %vm274, %v807, 0
    %810 = vmatprep.subr.mxu0 %v220
    %811 = vmatpush1.msra.mxu0 %v219
    %812 = vmatprep.subr.mxu0 %v222
    %813 = vmatpush1.msra.mxu0 %v221
    %814 = vmatprep.subr.mxu0 %v224
    %815 = vmatpush1.msra.mxu0 %v223
    %816 = vmatprep.subr.mxu0 %v226
    %817 = vmatpush1.msra.mxu0 %v225
    %818 = vmatprep.subr.mxu0 %v228
    %819 = vmatpush1.msra.mxu0 %v227
    %820 = vmatprep.subr.mxu0 %v230
    %821 = vmatpush1.msra.mxu0 %v229
    %822 = vmatprep.subr.mxu0 %v232
    %823 = vmatpush1.msra.mxu0 %v231
    %824 = vmatprep.subr.mxu0 %v234
    %825 = vmatpush1.msra.mxu0 %v233
    %826 = vmatprep.subr.mxu0 0.0
    %827 = vmatpush1.msra.mxu0 0.0
    %828 = vmatprep.subr.mxu0 0.0
    %829 = vmatpush1.msra.mxu0 0.0
    %830 = vmatprep.subr.mxu0 0.0
    %831 = vmatpush1.msra.mxu0 0.0
    %832 = vmatprep.subr.mxu0 0.0
    %833 = vmatpush1.msra.mxu0 0.0
    %834 = vmatprep.subr.mxu0 0.0
    %835 = vmatpush1.msra.mxu0 0.0
    %836 = vmatprep.subr.mxu0 0.0
    %837 = vmatpush1.msra.mxu0 0.0
    %838 = vmatprep.subr.mxu0 0.0
    %839 = vmatpush1.msra.mxu0 0.0
    %840 = vmatprep.subr.mxu0 0.0
    %841 = vmatpush1.msra.mxu0 0.0
    %842 = vmatprep.subr.mxu0 0.0
    %843 = vmatpush1.msra.mxu0 0.0
    %844 = vmatprep.subr.mxu0 0.0
    %845 = vmatpush1.msra.mxu0 0.0
    %846 = vmatprep.subr.mxu0 0.0
    %847 = vmatpush1.msra.mxu0 0.0
    %848 = vmatprep.subr.mxu0 0.0
    %849 = vmatpush1.msra.mxu0 0.0
    %850 = vmatprep.subr.mxu0 0.0
    %851 = vmatpush1.msra.mxu0 0.0
    %852 = vmatprep.subr.mxu0 0.0
    %853 = vmatpush1.msra.mxu0 0.0
    %854 = vmatprep.subr.mxu0 0.0
    %855 = vmatpush1.msra.mxu0 0.0
    %856 = vmatprep.subr.mxu0 0.0
    %857 = vmatpush1.msra.mxu0 0.0
    %858 = vmatprep.subr.mxu0 0.0
    %859 = vmatpush1.msra.mxu0 0.0
    %860 = vmatprep.subr.mxu0 0.0
    %861 = vmatpush1.msra.mxu0 0.0
    %862 = vmatprep.subr.mxu0 0.0
    %863 = vmatpush1.msra.mxu0 0.0
    %864 = vmatprep.subr.mxu0 0.0
    %865 = vmatpush1.msra.mxu0 0.0
    %866 = vmatprep.subr.mxu0 0.0
    %867 = vmatpush1.msra.mxu0 0.0
    %868 = vmatprep.subr.mxu0 0.0
    %869 = vmatpush1.msra.mxu0 0.0
    %870 = vmatprep.subr.mxu0 0.0
    %871 = vmatpush1.msra.mxu0 0.0
    %872 = vmatprep.subr.mxu0 0.0
    %873 = vmatpush1.msra.mxu0 0.0
    %874 = vmatprep.mubr.f32.mxu0 0.0
    %875 = vmatmul.mubr.f32.gmra.mrb[0].mxu0 %v808
    %v876 = vpop.f32.mrb[0].mxu0
    %v877 = vadd.f32 0.0, %v876
    %v878 = vpop.f32.mrb[0].mxu0
    %v879 = vadd.f32 0.0, %v878
    %880 = vdwg.mxu0
    %v881 = vadd.f32 %v804, %v877
    %v882 = vadd.f32 %v805, %v879
    %v883 = vxor.u32 %v881, 2147483648
    %v884 = vmul.f32 %v883, 1.442695
    %v885 = vpow.pop %v884
    %v886 = vadd.f32 %v885, 1.0
    %v887 = vrcp.pop %v886
    %v888 = vmul.f32 1.0, %v887
    %v889 = vtanh.pop %v882
    %v890 = vxor.u32 %v882, 2147483648
    %v891 = vmul.f32 %v890, 1.442695
    %v892 = vpow.pop %v891
    %v893 = vadd.f32 %v892, 1.0
    %v894 = vrcp.pop %v893
    %v895 = vmul.f32 1.0, %v894
    %v896 = vmul.f32 %v888, %v796
    %v897 = vmul.f32 %v888, %v889
    %899 = vrot.lane.b32.xlu0 %v897, 64
    %v900 = vpop.permute.xlu0 %899
    %v902 = vadd.f32 %v896, %v900
    %v903 = vtanh.pop %v902
    %v904 = vmul.f32 %v895, %v903
    %906 = vrot.lane.b32.xlu0 %v904, 64
    %v907 = vpop.permute.xlu0 %906
    %909 = vst.msk [vmem:[#allocation3 + $0x8] sm:$0xff] %vm487, %v907
    %v910 = vld [vmem:[#allocation2 + $0x70] sm:$0xff]
    %v911 = vld [vmem:[#allocation2 + $0x78] sm:$0xff]
    %v912 = vsel %vm274, %v907, 0
    %914 = vmatprep.subr.mxu0 %v220
    %915 = vmatpush1.msra.mxu0 %v219
    %916 = vmatprep.subr.mxu0 %v222
    %917 = vmatpush1.msra.mxu0 %v221
    %918 = vmatprep.subr.mxu0 %v224
    %919 = vmatpush1.msra.mxu0 %v223
    %920 = vmatprep.subr.mxu0 %v226
    %921 = vmatpush1.msra.mxu0 %v225
    %922 = vmatprep.subr.mxu0 %v228
    %923 = vmatpush1.msra.mxu0 %v227
    %924 = vmatprep.subr.mxu0 %v230
    %925 = vmatpush1.msra.mxu0 %v229
    %926 = vmatprep.subr.mxu0 %v232
    %927 = vmatpush1.msra.mxu0 %v231
    %928 = vmatprep.subr.mxu0 %v234
    %929 = vmatpush1.msra.mxu0 %v233
    %930 = vmatprep.subr.mxu0 0.0
    %931 = vmatpush1.msra.mxu0 0.0
    %932 = vmatprep.subr.mxu0 0.0
    %933 = vmatpush1.msra.mxu0 0.0
    %934 = vmatprep.subr.mxu0 0.0
    %935 = vmatpush1.msra.mxu0 0.0
    %936 = vmatprep.subr.mxu0 0.0
    %937 = vmatpush1.msra.mxu0 0.0
    %938 = vmatprep.subr.mxu0 0.0
    %939 = vmatpush1.msra.mxu0 0.0
    %940 = vmatprep.subr.mxu0 0.0
    %941 = vmatpush1.msra.mxu0 0.0
    %942 = vmatprep.subr.mxu0 0.0
    %943 = vmatpush1.msra.mxu0 0.0
    %944 = vmatprep.subr.mxu0 0.0
    %945 = vmatpush1.msra.mxu0 0.0
    %946 = vmatprep.subr.mxu0 0.0
    %947 = vmatpush1.msra.mxu0 0.0
    %948 = vmatprep.subr.mxu0 0.0
    %949 = vmatpush1.msra.mxu0 0.0
    %950 = vmatprep.subr.mxu0 0.0
    %951 = vmatpush1.msra.mxu0 0.0
    %952 = vmatprep.subr.mxu0 0.0
    %953 = vmatpush1.msra.mxu0 0.0
    %954 = vmatprep.subr.mxu0 0.0
    %955 = vmatpush1.msra.mxu0 0.0
    %956 = vmatprep.subr.mxu0 0.0
    %957 = vmatpush1.msra.mxu0 0.0
    %958 = vmatprep.subr.mxu0 0.0
    %959 = vmatpush1.msra.mxu0 0.0
    %960 = vmatprep.subr.mxu0 0.0
    %961 = vmatpush1.msra.mxu0 0.0
    %962 = vmatprep.subr.mxu0 0.0
    %963 = vmatpush1.msra.mxu0 0.0
    %964 = vmatprep.subr.mxu0 0.0
    %965 = vmatpush1.msra.mxu0 0.0
    %966 = vmatprep.subr.mxu0 0.0
    %967 = vmatpush1.msra.mxu0 0.0
    %968 = vmatprep.subr.mxu0 0.0
    %969 = vmatpush1.msra.mxu0 0.0
    %970 = vmatprep.subr.mxu0 0.0
    %971 = vmatpush1.msra.mxu0 0.0
    %972 = vmatprep.subr.mxu0 0.0
    %973 = vmatpush1.msra.mxu0 0.0
    %974 = vmatprep.subr.mxu0 0.0
    %975 = vmatpush1.msra.mxu0 0.0
    %976 = vmatprep.subr.mxu0 0.0
    %977 = vmatpush1.msra.mxu0 0.0
    %978 = vmatprep.mubr.f32.mxu0 0.0
    %979 = vmatmul.mubr.f32.gmra.mrb[0].mxu0 %v912
    %v980 = vpop.f32.mrb[0].mxu0
    %v981 = vadd.f32 0.0, %v980
    %v982 = vpop.f32.mrb[0].mxu0
    %v983 = vadd.f32 0.0, %v982
    %984 = vdwg.mxu0
    %v985 = vadd.f32 %v910, %v981
    %v986 = vadd.f32 %v911, %v983
    %v987 = vxor.u32 %v985, 2147483648
    %v988 = vmul.f32 %v987, 1.442695
    %v989 = vpow.pop %v988
    %v990 = vadd.f32 %v989, 1.0
    %v991 = vrcp.pop %v990
    %v992 = vmul.f32 1.0, %v991
    %v993 = vtanh.pop %v986
    %v994 = vxor.u32 %v986, 2147483648
    %v995 = vmul.f32 %v994, 1.442695
    %v996 = vpow.pop %v995
    %v997 = vadd.f32 %v996, 1.0
    %v998 = vrcp.pop %v997
    %v999 = vmul.f32 1.0, %v998
    %v1000 = vmul.f32 %v992, %v902
    %v1001 = vmul.f32 %v992, %v993
    %1003 = vrot.lane.b32.xlu0 %v1001, 64
    %v1004 = vpop.permute.xlu0 %1003
    %v1006 = vadd.f32 %v1000, %v1004
    %v1007 = vtanh.pop %v1006
    %v1008 = vmul.f32 %v999, %v1007
    %1010 = vrot.lane.b32.xlu0 %v1008, 96
    %v1011 = vpop.permute.xlu0 %1010
    %1013 = vst.msk [vmem:[#allocation3 + $0x8] sm:$0xff] %vm592, %v1011
    %v1014 = vld [vmem:[#allocation2 + $0x80] sm:$0xff]
    %v1015 = vld [vmem:[#allocation2 + $0x88] sm:$0xff]
    %1016 = vrot.lane.b32.xlu0 %v1008, 64
    %v1017 = vpop.permute.xlu0 %1016
    %v1018 = vsel %vm274, %v1017, 0
    %1020 = vmatprep.subr.mxu0 %v220
    %1021 = vmatpush1.msra.mxu0 %v219
    %1022 = vmatprep.subr.mxu0 %v222
    %1023 = vmatpush1.msra.mxu0 %v221
    %1024 = vmatprep.subr.mxu0 %v224
    %1025 = vmatpush1.msra.mxu0 %v223
    %1026 = vmatprep.subr.mxu0 %v226
    %1027 = vmatpush1.msra.mxu0 %v225
    %1028 = vmatprep.subr.mxu0 %v228
    %1029 = vmatpush1.msra.mxu0 %v227
    %1030 = vmatprep.subr.mxu0 %v230
    %1031 = vmatpush1.msra.mxu0 %v229
    %1032 = vmatprep.subr.mxu0 %v232
    %1033 = vmatpush1.msra.mxu0 %v231
    %1034 = vmatprep.subr.mxu0 %v234
    %1035 = vmatpush1.msra.mxu0 %v233
    %1036 = vmatprep.subr.mxu0 0.0
    %1037 = vmatpush1.msra.mxu0 0.0
    %1038 = vmatprep.subr.mxu0 0.0
    %1039 = vmatpush1.msra.mxu0 0.0
    %1040 = vmatprep.subr.mxu0 0.0
    %1041 = vmatpush1.msra.mxu0 0.0
    %1042 = vmatprep.subr.mxu0 0.0
    %1043 = vmatpush1.msra.mxu0 0.0
    %1044 = vmatprep.subr.mxu0 0.0
    %1045 = vmatpush1.msra.mxu0 0.0
    %1046 = vmatprep.subr.mxu0 0.0
    %1047 = vmatpush1.msra.mxu0 0.0
    %1048 = vmatprep.subr.mxu0 0.0
    %1049 = vmatpush1.msra.mxu0 0.0
    %1050 = vmatprep.subr.mxu0 0.0
    %1051 = vmatpush1.msra.mxu0 0.0
    %1052 = vmatprep.subr.mxu0 0.0
    %1053 = vmatpush1.msra.mxu0 0.0
    %1054 = vmatprep.subr.mxu0 0.0
    %1055 = vmatpush1.msra.mxu0 0.0
    %1056 = vmatprep.subr.mxu0 0.0
    %1057 = vmatpush1.msra.mxu0 0.0
    %1058 = vmatprep.subr.mxu0 0.0
    %1059 = vmatpush1.msra.mxu0 0.0
    %1060 = vmatprep.subr.mxu0 0.0
    %1061 = vmatpush1.msra.mxu0 0.0
    %1062 = vmatprep.subr.mxu0 0.0
    %1063 = vmatpush1.msra.mxu0 0.0
    %1064 = vmatprep.subr.mxu0 0.0
    %1065 = vmatpush1.msra.mxu0 0.0
    %1066 = vmatprep.subr.mxu0 0.0
    %1067 = vmatpush1.msra.mxu0 0.0
    %1068 = vmatprep.subr.mxu0 0.0
    %1069 = vmatpush1.msra.mxu0 0.0
    %1070 = vmatprep.subr.mxu0 0.0
    %1071 = vmatpush1.msra.mxu0 0.0
    %1072 = vmatprep.subr.mxu0 0.0
    %1073 = vmatpush1.msra.mxu0 0.0
    %1074 = vmatprep.subr.mxu0 0.0
    %1075 = vmatpush1.msra.mxu0 0.0
    %1076 = vmatprep.subr.mxu0 0.0
    %1077 = vmatpush1.msra.mxu0 0.0
    %1078 = vmatprep.subr.mxu0 0.0
    %1079 = vmatpush1.msra.mxu0 0.0
    %1080 = vmatprep.subr.mxu0 0.0
    %1081 = vmatpush1.msra.mxu0 0.0
    %1082 = vmatprep.subr.mxu0 0.0
    %1083 = vmatpush1.msra.mxu0 0.0
    %1084 = vmatprep.mubr.f32.mxu0 0.0
    %1085 = vmatmul.mubr.f32.gmra.mrb[0].mxu0 %v1018
    %v1086 = vpop.f32.mrb[0].mxu0
    %v1087 = vadd.f32 0.0, %v1086
    %v1088 = vpop.f32.mrb[0].mxu0
    %v1089 = vadd.f32 0.0, %v1088
    %1090 = vdwg.mxu0
    %v1091 = vadd.f32 %v1014, %v1087
    %v1092 = vadd.f32 %v1015, %v1089
    %v1093 = vxor.u32 %v1091, 2147483648
    %v1094 = vmul.f32 %v1093, 1.442695
    %v1095 = vpow.pop %v1094
    %v1096 = vadd.f32 %v1095, 1.0
    %v1097 = vrcp.pop %v1096
    %v1098 = vmul.f32 1.0, %v1097
    %v1099 = vtanh.pop %v1092
    %v1100 = vxor.u32 %v1092, 2147483648
    %v1101 = vmul.f32 %v1100, 1.442695
    %v1102 = vpow.pop %v1101
    %v1103 = vadd.f32 %v1102, 1.0
    %v1104 = vrcp.pop %v1103
    %v1105 = vmul.f32 1.0, %v1104
    %v1106 = vmul.f32 %v1098, %v1006
    %v1107 = vmul.f32 %v1098, %v1099
    %1109 = vrot.lane.b32.xlu0 %v1107, 64
    %v1110 = vpop.permute.xlu0 %1109
    %v1112 = vadd.f32 %v1106, %v1110
    %v1113 = vtanh.pop %v1112
    %v1114 = vmul.f32 %v1105, %v1113
    %1115 = vst.msk [vmem:[#allocation3 + $0x8] sm:$0xff] %vm695, %v1114
    %v1116 = vld [vmem:[#allocation3] sm:$0xff]
    %v1117 = vld [vmem:[#allocation3 + $0x8] sm:$0xff]
    %v1118 = vld [vmem:[%s4] sm:$0xff]
    %v1119 = vld [vmem:[%s4 + $0x8] sm:$0xff]
    %v1120 = vld [vmem:[%s4 + $0x10] sm:$0xff]
    %v1121 = vld [vmem:[%s4 + $0x18] sm:$0xff]
    %v1122 = vld [vmem:[%s4 + $0x20] sm:$0xff]
    %v1123 = vld [vmem:[%s4 + $0x28] sm:$0xff]
    %v1124 = vld [vmem:[%s4 + $0x30] sm:$0xff]
    %v1125 = vld [vmem:[%s4 + $0x38] sm:$0xff]
    %v1126 = vld [vmem:[%s4 + $0x40] sm:$0xff]
    %v1127 = vld [vmem:[%s4 + $0x48] sm:$0xff]
    %v1128 = vld [vmem:[%s4 + $0x50] sm:$0xff]
    %v1129 = vld [vmem:[%s4 + $0x58] sm:$0xff]
    %v1130 = vld [vmem:[%s4 + $0x60] sm:$0xff]
    %v1131 = vld [vmem:[%s4 + $0x68] sm:$0xff]
    %v1132 = vld [vmem:[%s4 + $0x70] sm:$0xff]
    %v1133 = vld [vmem:[%s4 + $0x78] sm:$0xff]
    %v1134 = vld [vmem:[%s4 + $0x80] sm:$0xff]
    %v1135 = vld [vmem:[%s4 + $0x88] sm:$0xff]
    %v1136 = vld [vmem:[%s4 + $0x90] sm:$0xff]
    %v1137 = vld [vmem:[%s4 + $0x98] sm:$0xff]
    %v1138 = vld [vmem:[%s4 + $0xa0] sm:$0xff]
    %v1139 = vld [vmem:[%s4 + $0xa8] sm:$0xff]
    %v1140 = vld [vmem:[%s4 + $0xb0] sm:$0xff]
    %v1141 = vld [vmem:[%s4 + $0xb8] sm:$0xff]
    %v1142 = vld [vmem:[%s4 + $0xc0] sm:$0xff]
    %v1143 = vld [vmem:[%s4 + $0xc8] sm:$0xff]
    %v1144 = vld [vmem:[%s4 + $0xd0] sm:$0xff]
    %v1145 = vld [vmem:[%s4 + $0xd8] sm:$0xff]
    %v1146 = vld [vmem:[%s4 + $0xe0] sm:$0xff]
    %v1147 = vld [vmem:[%s4 + $0xe8] sm:$0xff]
    %v1148 = vld [vmem:[%s4 + $0xf0] sm:$0xff]
    %v1149 = vld [vmem:[%s4 + $0xf8] sm:$0xff]
    %s1150 = sld [smem:[#allocation4]]
    %v1151 = vstv %s1150
    %1152 = vmatprep.subr.mxu0 0.0
    %1153 = vmatpush1.msra.mxu0 %v1118
    %1154 = vmatprep.subr.mxu0 0.0
    %1155 = vmatpush1.msra.mxu0 %v1119
    %1156 = vmatprep.subr.mxu0 0.0
    %1157 = vmatpush1.msra.mxu0 %v1120
    %1158 = vmatprep.subr.mxu0 0.0
    %1159 = vmatpush1.msra.mxu0 %v1121
    %1160 = vmatprep.subr.mxu0 0.0
    %1161 = vmatpush1.msra.mxu0 %v1122
    %1162 = vmatprep.subr.mxu0 0.0
    %1163 = vmatpush1.msra.mxu0 %v1123
    %1164 = vmatprep.subr.mxu0 0.0
    %1165 = vmatpush1.msra.mxu0 %v1124
    %1166 = vmatprep.subr.mxu0 0.0
    %1167 = vmatpush1.msra.mxu0 %v1125
    %1168 = vmatprep.subr.mxu0 0.0
    %1169 = vmatpush1.msra.mxu0 %v1126
    %1170 = vmatprep.subr.mxu0 0.0
    %1171 = vmatpush1.msra.mxu0 %v1127
    %1172 = vmatprep.subr.mxu0 0.0
    %1173 = vmatpush1.msra.mxu0 %v1128
    %1174 = vmatprep.subr.mxu0 0.0
    %1175 = vmatpush1.msra.mxu0 %v1129
    %1176 = vmatprep.subr.mxu0 0.0
    %1177 = vmatpush1.msra.mxu0 %v1130
    %1178 = vmatprep.subr.mxu0 0.0
    %1179 = vmatpush1.msra.mxu0 %v1131
    %1180 = vmatprep.subr.mxu0 0.0
    %1181 = vmatpush1.msra.mxu0 %v1132
    %1182 = vmatprep.subr.mxu0 0.0
    %1183 = vmatpush1.msra.mxu0 %v1133
    %1184 = vmatprep.subr.mxu0 0.0
    %1185 = vmatpush1.msra.mxu0 %v1134
    %1186 = vmatprep.subr.mxu0 0.0
    %1187 = vmatpush1.msra.mxu0 %v1135
    %1188 = vmatprep.subr.mxu0 0.0
    %1189 = vmatpush1.msra.mxu0 %v1136
    %1190 = vmatprep.subr.mxu0 0.0
    %1191 = vmatpush1.msra.mxu0 %v1137
    %1192 = vmatprep.subr.mxu0 0.0
    %1193 = vmatpush1.msra.mxu0 %v1138
    %1194 = vmatprep.subr.mxu0 0.0
    %1195 = vmatpush1.msra.mxu0 %v1139
    %1196 = vmatprep.subr.mxu0 0.0
    %1197 = vmatpush1.msra.mxu0 %v1140
    %1198 = vmatprep.subr.mxu0 0.0
    %1199 = vmatpush1.msra.mxu0 %v1141
    %1200 = vmatprep.subr.mxu0 0.0
    %1201 = vmatpush1.msra.mxu0 %v1142
    %1202 = vmatprep.subr.mxu0 0.0
    %1203 = vmatpush1.msra.mxu0 %v1143
    %1204 = vmatprep.subr.mxu0 0.0
    %1205 = vmatpush1.msra.mxu0 %v1144
    %1206 = vmatprep.subr.mxu0 0.0
    %1207 = vmatpush1.msra.mxu0 %v1145
    %1208 = vmatprep.subr.mxu0 0.0
    %1209 = vmatpush1.msra.mxu0 %v1146
    %1210 = vmatprep.subr.mxu0 0.0
    %1211 = vmatpush1.msra.mxu0 %v1147
    %1212 = vmatprep.subr.mxu0 0.0
    %1213 = vmatpush1.msra.mxu0 %v1148
    %1214 = vmatprep.subr.mxu0 0.0
    %1215 = vmatpush1.msra.mxu0 %v1149
    %1216 = vmatprep.mubr.f32.mxu0 %v1117
    %1217 = vmatmul.mubr.f32.gmra.mrb[0].mxu0 %v1116
    %v1218 = vpop.f32.mrb[0].mxu0
    %v1219 = vadd.f32 %v1151, %v1218
    %v1220 = vpop.f32.mrb[0].mxu0
    %1221 = vdwg.mxu0
    %vm1222 = vcmask 58368
    %v1223 = vsel %vm1222, %v1219, -inf
    %1224 = vmax.xlane.f32.xlu0 %v1223
    %v1225 = vpop.xlane.xlu0 %1224
    %v1226 = vsub.f32 %v1219, %v1225
    %v1227 = vmul.f32 %v1226, 1.442695
    %v1228 = vpow.pop %v1227
    %v1229 = vsel %vm1222, %v1228, 0.0
    %1230 = vadd.xlane.f32.xlu0 %v1229
    %v1231 = vpop.xlane.xlu0 %1230
    %v1232 = vrcp.pop %v1231
    %v1233 = vmul.f32 %v1228, %v1232
    %1234 = vst.msk [vmem:[#allocation5] sm:$0x3] %vm1222, %v1233
    // Predicated region
    $region26: #{sequence_forward.1} parent=1 // pred_check
      _
    $region27: #{sequence_forward.1} parent=1 // pred_check_branch
      %1236 = sbr.rel (0) target = $region29
    $region28: #{sequence_forward.1} parent=1 // pred_region
      %s1238 = ssub.s32 32, 32
      %1239 = vsyncadd [#allocation6], %s1238
      %s1241 = sshll.u32 [#allocation5], 4
      %s1242 = int_to_ptr.vmem [resolvable:$true] %s1241
      %1244 = dma.vmem_to_hbm [thread:$0]  %s1242, 32, %s6, [#allocation6]
    $region29: #{sequence_forward.1} parent=1 // pred_fallthru
      _
    // Predicated region
    $region30: #{sequence_forward.1} parent=1 // pred_check
      _
    $region31: #{sequence_forward.1} parent=1 // pred_check_branch
      %1246 = sbr.rel (0) target = $region33
    $region32: #{sequence_forward.1} parent=1 // pred_region
      %1247 = dma.done [#allocation6], 32
    $region33: #{sequence_forward.1} parent=1 // pred_fallthru
      _
    %1248 = vsyncpa [#allocation6], 1

</llo_original>
